<compile_context>
chip_gen: v7x
topology: tpu7x:2x2x1
jax: 0.10.0
libtpu: 0.0.40
codegen_flags: <defaults>
</compile_context>

<pallas_src>
import functools

import numpy as np
import jax
import jax.numpy as jnp
from jax.experimental import pallas as pl
from jax.experimental.pallas import tpu as pltpu


# ----------------------------------------------------------------------------
# Fused Pallas kernel: all 4 ASPP branches + concat + 3x3 bottleneck.
# Everything stays in VMEM between stages; pixels live on the lane axis.
# ----------------------------------------------------------------------------
def _aspp_fused_kernel(x_ref, m1_ref, wc_ref, bc_ref, m2_ref, wb_ref, bb_ref,
                       o_ref, slab1_ref, slab2_ref,
                       *, W, cin, cat_c, offsets1, offsets2, M):
    xv = x_ref[...]                                           # (cin, M)

    # -- stage 1: ASPP im2col slab (n_off*cin, M).  Tap (dh,dw) at pixel i is
    #    x[i + dh*W + dw] -> one static lane-roll (XLU) + boundary mask (VPU),
    #    then an aligned full-vreg store into the slab (8 sublanes x M lanes).
    for t, (dh, dw) in enumerate(offsets1):
        off = dh * W + dw
        if off == 0:
            v = xv
        else:
            v = pltpu.roll(xv, shift=(-off) % M, axis=1) * m1_ref[t:t + 1, :]
        slab1_ref[t * cin:(t + 1) * cin, :] = v

    # -- stage 2: ALL four branch convs as ONE matmul (K = n_off*cin).  The BN
    #    scales are pre-folded into wc rows; only bias + ReLU remain.
    #    `cat` == torch.cat(aspp_outs, dim=1), laid out (cat_c, M).
    cat = jnp.dot(wc_ref[...], slab1_ref[...],
                  preferred_element_type=jnp.float32)         # (cat_c, M)
    cat = jnp.maximum(cat + bc_ref[...], 0.0)

    # -- stage 3: 3x3 bottleneck im2col slab (9*cat_c, M), same roll+mask trick
    #    (no padded cat scratch, no re-zeroing).
    for t, (dh, dw) in enumerate(offsets2):
        off = dh * W + dw
        if off == 0:
            v = cat
        else:
            v = pltpu.roll(cat, shift=(-off) % M, axis=1) * m2_ref[t:t + 1, :]
        slab2_ref[t * cat_c:(t + 1) * cat_c, :] = v

    # -- stage 4: bottleneck matmul -> lane-dense (cout, M) output store.
    out = jnp.dot(wb_ref[...], slab2_ref[...],
                  preferred_element_type=jnp.float32)         # (cout, M)
    o_ref[...] = jnp.maximum(out + bb_ref[...], 0.0)


# ----------------------------------------------------------------------------
# Host-side parameter fusion: combine the 4 branch convs into one transposed
# weight matrix over the union of statically-active tap offsets, flatten the
# bottleneck weight, and fold the BN scales (+Conv2d bias) into the weights.
# ----------------------------------------------------------------------------
def prepare_fused_params(params, H, W):
    branches = params["branches"]
    nb = len(branches)
    cin = branches[0][0].shape[2]
    cout = branches[0][0].shape[3]
    cat_c = nb * cout

    # Union of tap offsets that can touch real pixels.  A tap whose shifted
    # window lies entirely outside the image (|offset| >= H or >= W) is
    # dropped statically (e.g. every non-center tap of the dilation-24 branch
    # on a 16x16 map).
    offsets, taps = [], []
    for (w, _, _, d) in branches:
        k = w.shape[0]
        c0 = (k - 1) // 2
        b_taps = []
        for kh in range(k):
            for kw in range(k):
                dh, dw = (kh - c0) * d, (kw - c0) * d
                if abs(dh) >= H or abs(dw) >= W:
                    continue                      # statically-zero tap
                if (dh, dw) not in offsets:
                    offsets.append((dh, dw))
                b_taps.append((kh, kw, offsets.index((dh, dw))))
        taps.append(b_taps)
    n_off = len(offsets)

    # Combined ASPP weight, transposed to (cat_c, n_off*cin), BN scale folded.
    wcT = np.zeros((cat_c, n_off * cin), np.float32)
    bc = np.zeros((cat_c,), np.float32)
    for b, (w, scale, bias, _) in enumerate(branches):
        w = np.asarray(w, np.float32)             # HWIO: (k, k, cin, cout)
        s = np.asarray(scale, np.float32)         # (cout,)
        for kh, kw, t in taps[b]:
            wcT[b * cout:(b + 1) * cout, t * cin:(t + 1) * cin] += \
                w[kh, kw].T * s[:, None]
        bc[b * cout:(b + 1) * cout] = np.asarray(bias, np.float32)

    wb, sb, bb = params["bottleneck"]
    wb = np.asarray(wb, np.float32)               # (3, 3, cat_c, cout)
    sb = np.asarray(sb, np.float32)
    wbT = np.zeros((cout, 9 * cat_c), np.float32)
    for kh in range(3):
        for kw in range(3):
            t = kh * 3 + kw
            wbT[:, t * cat_c:(t + 1) * cat_c] = wb[kh, kw].T * sb[:, None]

    return dict(
        offsets=tuple(offsets), n_off=int(n_off),
        cin=int(cin), cout=int(cout), cat_c=int(cat_c),
        wc=jnp.asarray(wcT),
        bc=jnp.asarray(bc).reshape(cat_c, 1),
        wb=jnp.asarray(wbT),
        bb=jnp.reshape(jnp.asarray(bb, jnp.float32), (cout, 1)),
    )


def _make_masks(offsets, H, W, images_per_step):
    """0/1 boundary masks per tap, tiled over the images in one grid step."""
    HW = H * W
    hh, ww = np.meshgrid(np.arange(H), np.arange(W), indexing="ij")
    rows = []
    for dh, dw in offsets:
        valid = ((hh + dh >= 0) & (hh + dh < H) &
                 (ww + dw >= 0) & (ww + dw < W))
        rows.append(np.tile(valid.reshape(HW).astype(np.float32),
                            images_per_step))
    return np.stack(rows, axis=0)                 # (n_taps, images*HW)


# ----------------------------------------------------------------------------
# AsppFusion forward (Pallas path): NCDHW in, NCHW out.
# batch_groups=1 folds the whole batch into one grid step (best on single-TC
# v5e/v6e); batch_groups=2 splits the batch across the two v7x TensorCores.
# ----------------------------------------------------------------------------
def aspp_fusion_forward(x_ncdhw, params, *, batch_groups=1):
    N, C, D, H, W = x_ncdhw.shape
    assert D == 2, "ASPP3d depth-2 kernels with no depth padding require D=2"
    assert N % batch_groups == 0
    cin = C * D
    HW = H * W
    ng = N // batch_groups                        # images per grid step
    M = ng * HW                                   # lane extent per step

    fp = prepare_fused_params(params, H, W)
    cout, cat_c, n_off = fp["cout"], fp["cat_c"], fp["n_off"]
    offs1 = fp["offsets"]
    offs2 = tuple((kh - 1, kw - 1) for kh in range(3) for kw in range(3))

    # (N, C, D, H, W) -> channel-major, pixel-minor (cin, N*H*W).
    # Depth merges into channels as index c*D + kd (Conv3d weight flattening).
    x_cm = jnp.transpose(x_ncdhw.reshape(N, cin, H, W).astype(jnp.float32),
                         (1, 0, 2, 3)).reshape(cin, N * HW)

    m1 = jnp.asarray(_make_masks(offs1, H, W, ng))    # (n_off, M)
    m2 = jnp.asarray(_make_masks(offs2, H, W, ng))    # (9, M)

    kernel = functools.partial(_aspp_fused_kernel, W=W, cin=cin, cat_c=cat_c,
                               offsets1=offs1, offsets2=offs2, M=M)

    flops = 2 * N * HW * (n_off * cin * cat_c + 9 * cat_c * cout)
    bytes_accessed = 4 * (x_cm.size + m1.size + m2.size + fp["wc"].size
                          + fp["wb"].size + cat_c + cout + cout * N * HW)

    out = pl.pallas_call(
        kernel,
        out_shape=jax.ShapeDtypeStruct((cout, N * HW), jnp.float32),
        grid_spec=pltpu.PrefetchScalarGridSpec(
            num_scalar_prefetch=0,
            grid=(batch_groups,),
            in_specs=[
                pl.BlockSpec((cin, M), lambda g: (0, g)),
                pl.BlockSpec((n_off, M), lambda g: (0, 0)),
                pl.BlockSpec((cat_c, n_off * cin), lambda g: (0, 0)),
                pl.BlockSpec((cat_c, 1), lambda g: (0, 0)),
                pl.BlockSpec((9, M), lambda g: (0, 0)),
                pl.BlockSpec((cout, 9 * cat_c), lambda g: (0, 0)),
                pl.BlockSpec((cout, 1), lambda g: (0, 0)),
            ],
            out_specs=pl.BlockSpec((cout, M), lambda g: (0, g)),
            scratch_shapes=[
                pltpu.VMEM((n_off * cin, M), jnp.float32),   # ASPP slab
                pltpu.VMEM((9 * cat_c, M), jnp.float32),     # bottleneck slab
            ]),
        compiler_params=pltpu.CompilerParams(
            dimension_semantics=("parallel",)),
        cost_estimate=pl.CostEstimate(flops=int(flops), transcendentals=0,
                                      bytes_accessed=int(bytes_accessed)),
    )(x_cm, m1, fp["wc"], fp["bc"], m2, fp["wb"], fp["bb"])

    # (cout, N*H*W) -> (N, cout, H, W); tiny XLA transpose (8 KB here).
    return jnp.transpose(out.reshape(cout, N, H, W), (1, 0, 2, 3))


# ----------------------------------------------------------------------------
# Pure-JAX reference of the same module (for correctness check).
# ----------------------------------------------------------------------------
def ref_forward(x_ncdhw, params):
    N, C, D, H, W = x_ncdhw.shape
    x = jnp.transpose(x_ncdhw.reshape(N, C * D, H, W), (0, 2, 3, 1))
    outs = []
    for w, scale, bias, d in params["branches"]:
        k = w.shape[0]
        p = d * (k - 1) // 2
        y = jax.lax.conv_general_dilated(
            x, w, window_strides=(1, 1), padding=((p, p), (p, p)),
            rhs_dilation=(d, d), dimension_numbers=('NHWC', 'HWIO', 'NHWC'))
        outs.append(jnp.maximum(y * scale + bias, 0.0))
    cat = jnp.concatenate(outs, axis=-1)
    wb, sb, bb = params["bottleneck"]
    y = jax.lax.conv_general_dilated(
        cat, wb, window_strides=(1, 1), padding=((1, 1), (1, 1)),
        dimension_numbers=('NHWC', 'HWIO', 'NHWC'))
    y = jnp.maximum(y * sb + bb, 0.0)
    return jnp.transpose(y, (0, 3, 1, 2))


# ----------------------------------------------------------------------------
# Parameter construction (deterministic, synthetic, eval-mode folded BN).
# ----------------------------------------------------------------------------
def _fold_bn(cout, eps=1e-5):
    gamma = jnp.ones((cout,), jnp.float32)
    beta = jnp.zeros((cout,), jnp.float32)
    mean = jnp.zeros((cout,), jnp.float32)
    var = jnp.ones((cout,), jnp.float32)
    scale = gamma / jnp.sqrt(var + eps)
    bias = beta - mean * scale
    return scale, bias


def init_params(key, features, out_features, dilations):
    cin = 2 * features  # depth(=2) merged into channels
    keys = jax.random.split(key, len(dilations) + 2)
    branches = []
    for i, d in enumerate(dilations):
        k = 1 if d == 1 else 3           # (2,1,1) vs (2,3,3) Conv3d kernels
        w = 0.1 * jax.random.normal(keys[i], (k, k, cin, out_features),
                                    jnp.float32)
        scale, bias = _fold_bn(out_features)
        branches.append((w, scale, bias, d))

    cb = len(dilations) * out_features
    wb = 0.05 * jax.random.normal(keys[-2], (3, 3, cb, out_features),
                                  jnp.float32)
    b_conv = 0.05 * jax.random.normal(keys[-1], (out_features,), jnp.float32)
    scale_b, bias_b = _fold_bn(out_features)
    bias_b = bias_b + scale_b * b_conv   # fold the Conv2d bias into the affine
    return {"branches": branches, "bottleneck": (wb, scale_b, bias_b)}


# ----------------------------------------------------------------------------
if __name__ == "__main__":
    key = jax.random.PRNGKey(0)
    kx, kp = jax.random.split(key)

    N, features, D, H, W = 2, 4, 2, 16, 16
    out_features = 4
    dilations = (1, 8, 12, 24)

    fusion_fea = jax.random.normal(kx, (N, features, D, H, W), jnp.float32)
    params = init_params(kp, features, out_features, dilations)

    out = aspp_fusion_forward(fusion_fea, params, batch_groups=1)
    out = jax.block_until_ready(out)
    assert out.shape == (N, out_features, H, W), out.shape

    ref = jax.block_until_ready(ref_forward(fusion_fea, params))
    err = float(jnp.max(jnp.abs(out - ref)))
    assert err < 1e-3, f"mismatch vs reference: {err}"

    print("KERNEL_OK")
</pallas_src>

<mosaic_0001>
module attributes {stable_mosaic.version = 11 : i64} {
  func.func @_aspp_fused_kernel(%arg0: i32, %arg1: memref<8x512xf32, #tpu.memory_space<vmem>>, %arg2: memref<17x512xf32, #tpu.memory_space<vmem>>, %arg3: memref<16x136xf32, #tpu.memory_space<vmem>>, %arg4: memref<16x1xf32, #tpu.memory_space<vmem>>, %arg5: memref<9x512xf32, #tpu.memory_space<vmem>>, %arg6: memref<4x144xf32, #tpu.memory_space<vmem>>, %arg7: memref<4x1xf32, #tpu.memory_space<vmem>>, %arg8: memref<4x512xf32, #tpu.memory_space<vmem>>, %arg9: memref<136x512xf32, #tpu.memory_space<vmem>>, %arg10: memref<144x512xf32, #tpu.memory_space<vmem>>) attributes {dimension_semantics = [#tpu.dimension_semantics<parallel>], iteration_bounds = array<i64: 1>, scalar_prefetch = 0 : i64, scratch_operands = 2 : i64, tpu.core_type = #tpu.core_type<tc>, window_params = [{transform_indices = @transform_0, window_bounds = array<i64: 8, 512>}, {pipeline_mode = #tpu.pipeline_mode<synchronous>, transform_indices = @transform_1, window_bounds = array<i64: 17, 512>}, {pipeline_mode = #tpu.pipeline_mode<synchronous>, transform_indices = @transform_2, window_bounds = array<i64: 16, 136>}, {pipeline_mode = #tpu.pipeline_mode<synchronous>, transform_indices = @transform_3, window_bounds = array<i64: 16, 1>}, {pipeline_mode = #tpu.pipeline_mode<synchronous>, transform_indices = @transform_4, window_bounds = array<i64: 9, 512>}, {pipeline_mode = #tpu.pipeline_mode<synchronous>, transform_indices = @transform_5, window_bounds = array<i64: 4, 144>}, {pipeline_mode = #tpu.pipeline_mode<synchronous>, transform_indices = @transform_6, window_bounds = array<i64: 4, 1>}, {transform_indices = @transform_7, window_bounds = array<i64: 4, 512>}]} {
    %c0 = arith.constant 0 : index
    %c0_0 = arith.constant 0 : index
    %0 = vector.load %arg1[%c0, %c0_0] : memref<8x512xf32, #tpu.memory_space<vmem>>, vector<8x512xf32>
    %c0_1 = arith.constant 0 : index
    %c0_2 = arith.constant 0 : index
    %1 = vector.load %arg9[%c0_1, %c0_2] : memref<136x512xf32, #tpu.memory_space<vmem>>, vector<8x512xf32>
    tpu.vector_store %arg9[%c0_1, %c0_2], %0 {strides = array<i32>} : memref<136x512xf32, #tpu.memory_space<vmem>>, vector<8x512xf32>,
    %c136_i32 = arith.constant 136 : i32
    %2 = tpu.dynamic_rotate %0 by %c136_i32 dim 1 : vector<8x512xf32>, i32 -> vector<8x512xf32>
    %c1 = arith.constant 1 : index
    %c0_3 = arith.constant 0 : index
    %3 = vector.load %arg2[%c1, %c0_3] : memref<17x512xf32, #tpu.memory_space<vmem>>, vector<1x512xf32>
    %4 = vector.broadcast %3 : vector<1x512xf32> to vector<8x512xf32>
    %5 = arith.mulf %2, %4 : vector<8x512xf32>
    %c8 = arith.constant 8 : index
    %c0_4 = arith.constant 0 : index
    %6 = vector.load %arg9[%c8, %c0_4] : memref<136x512xf32, #tpu.memory_space<vmem>>, vector<8x512xf32>
    tpu.vector_store %arg9[%c8, %c0_4], %5 {strides = array<i32>} : memref<136x512xf32, #tpu.memory_space<vmem>>, vector<8x512xf32>,
    %c128_i32 = arith.constant 128 : i32
    %7 = tpu.dynamic_rotate %0 by %c128_i32 dim 1 : vector<8x512xf32>, i32 -> vector<8x512xf32>
    %c2 = arith.constant 2 : index
    %c0_5 = arith.constant 0 : index
    %8 = vector.load %arg2[%c2, %c0_5] : memref<17x512xf32, #tpu.memory_space<vmem>>, vector<1x512xf32>
    %9 = vector.broadcast %8 : vector<1x512xf32> to vector<8x512xf32>
    %10 = arith.mulf %7, %9 : vector<8x512xf32>
    %c16 = arith.constant 16 : index
    %c0_6 = arith.constant 0 : index
    %11 = vector.load %arg9[%c16, %c0_6] : memref<136x512xf32, #tpu.memory_space<vmem>>, vector<8x512xf32>
    tpu.vector_store %arg9[%c16, %c0_6], %10 {strides = array<i32>} : memref<136x512xf32, #tpu.memory_space<vmem>>, vector<8x512xf32>,
    %c120_i32 = arith.constant 120 : i32
    %12 = tpu.dynamic_rotate %0 by %c120_i32 dim 1 : vector<8x512xf32>, i32 -> vector<8x512xf32>
    %c3 = arith.constant 3 : index
    %c0_7 = arith.constant 0 : index
    %13 = vector.load %arg2[%c3, %c0_7] : memref<17x512xf32, #tpu.memory_space<vmem>>, vector<1x512xf32>
    %14 = vector.broadcast %13 : vector<1x512xf32> to vector<8x512xf32>
    %15 = arith.mulf %12, %14 : vector<8x512xf32>
    %c24 = arith.constant 24 : index
    %c0_8 = arith.constant 0 : index
    %16 = vector.load %arg9[%c24, %c0_8] : memref<136x512xf32, #tpu.memory_space<vmem>>, vector<8x512xf32>
    tpu.vector_store %arg9[%c24, %c0_8], %15 {strides = array<i32>} : memref<136x512xf32, #tpu.memory_space<vmem>>, vector<8x512xf32>,
    %c8_i32 = arith.constant 8 : i32
    %17 = tpu.dynamic_rotate %0 by %c8_i32 dim 1 : vector<8x512xf32>, i32 -> vector<8x512xf32>
    %c4 = arith.constant 4 : index
    %c0_9 = arith.constant 0 : index
    %18 = vector.load %arg2[%c4, %c0_9] : memref<17x512xf32, #tpu.memory_space<vmem>>, vector<1x512xf32>
    %19 = vector.broadcast %18 : vector<1x512xf32> to vector<8x512xf32>
    %20 = arith.mulf %17, %19 : vector<8x512xf32>
    %c32 = arith.constant 32 : index
    %c0_10 = arith.constant 0 : index
    %21 = vector.load %arg9[%c32, %c0_10] : memref<136x512xf32, #tpu.memory_space<vmem>>, vector<8x512xf32>
    tpu.vector_store %arg9[%c32, %c0_10], %20 {strides = array<i32>} : memref<136x512xf32, #tpu.memory_space<vmem>>, vector<8x512xf32>,
    %c504_i32 = arith.constant 504 : i32
    %22 = tpu.dynamic_rotate %0 by %c504_i32 dim 1 : vector<8x512xf32>, i32 -> vector<8x512xf32>
    %c5 = arith.constant 5 : index
    %c0_11 = arith.constant 0 : index
    %23 = vector.load %arg2[%c5, %c0_11] : memref<17x512xf32, #tpu.memory_space<vmem>>, vector<1x512xf32>
    %24 = vector.broadcast %23 : vector<1x512xf32> to vector<8x512xf32>
    %25 = arith.mulf %22, %24 : vector<8x512xf32>
    %c40 = arith.constant 40 : index
    %c0_12 = arith.constant 0 : index
    %26 = vector.load %arg9[%c40, %c0_12] : memref<136x512xf32, #tpu.memory_space<vmem>>, vector<8x512xf32>
    tpu.vector_store %arg9[%c40, %c0_12], %25 {strides = array<i32>} : memref<136x512xf32, #tpu.memory_space<vmem>>, vector<8x512xf32>,
    %c392_i32 = arith.constant 392 : i32
    %27 = tpu.dynamic_rotate %0 by %c392_i32 dim 1 : vector<8x512xf32>, i32 -> vector<8x512xf32>
    %c6 = arith.constant 6 : index
    %c0_13 = arith.constant 0 : index
    %28 = vector.load %arg2[%c6, %c0_13] : memref<17x512xf32, #tpu.memory_space<vmem>>, vector<1x512xf32>
    %29 = vector.broadcast %28 : vector<1x512xf32> to vector<8x512xf32>
    %30 = arith.mulf %27, %29 : vector<8x512xf32>
    %c48 = arith.constant 48 : index
    %c0_14 = arith.constant 0 : index
    %31 = vector.load %arg9[%c48, %c0_14] : memref<136x512xf32, #tpu.memory_space<vmem>>, vector<8x512xf32>
    tpu.vector_store %arg9[%c48, %c0_14], %30 {strides = array<i32>} : memref<136x512xf32, #tpu.memory_space<vmem>>, vector<8x512xf32>,
    %c384_i32 = arith.constant 384 : i32
    %32 = tpu.dynamic_rotate %0 by %c384_i32 dim 1 : vector<8x512xf32>, i32 -> vector<8x512xf32>
    %c7 = arith.constant 7 : index
    %c0_15 = arith.constant 0 : index
    %33 = vector.load %arg2[%c7, %c0_15] : memref<17x512xf32, #tpu.memory_space<vmem>>, vector<1x512xf32>
    %34 = vector.broadcast %33 : vector<1x512xf32> to vector<8x512xf32>
    %35 = arith.mulf %32, %34 : vector<8x512xf32>
    %c56 = arith.constant 56 : index
    %c0_16 = arith.constant 0 : index
    %36 = vector.load %arg9[%c56, %c0_16] : memref<136x512xf32, #tpu.memory_space<vmem>>, vector<8x512xf32>
    tpu.vector_store %arg9[%c56, %c0_16], %35 {strides = array<i32>} : memref<136x512xf32, #tpu.memory_space<vmem>>, vector<8x512xf32>,
    %c376_i32 = arith.constant 376 : i32
    %37 = tpu.dynamic_rotate %0 by %c376_i32 dim 1 : vector<8x512xf32>, i32 -> vector<8x512xf32>
    %c8_17 = arith.constant 8 : index
    %c0_18 = arith.constant 0 : index
    %38 = vector.load %arg2[%c8_17, %c0_18] : memref<17x512xf32, #tpu.memory_space<vmem>>, vector<1x512xf32>
    %39 = vector.broadcast %38 : vector<1x512xf32> to vector<8x512xf32>
    %40 = arith.mulf %37, %39 : vector<8x512xf32>
    %c64 = arith.constant 64 : index
    %c0_19 = arith.constant 0 : index
    %41 = vector.load %arg9[%c64, %c0_19] : memref<136x512xf32, #tpu.memory_space<vmem>>, vector<8x512xf32>
    tpu.vector_store %arg9[%c64, %c0_19], %40 {strides = array<i32>} : memref<136x512xf32, #tpu.memory_space<vmem>>, vector<8x512xf32>,
    %c204_i32 = arith.constant 204 : i32
    %42 = tpu.dynamic_rotate %0 by %c204_i32 dim 1 : vector<8x512xf32>, i32 -> vector<8x512xf32>
    %c9 = arith.constant 9 : index
    %c0_20 = arith.constant 0 : index
    %43 = vector.load %arg2[%c9, %c0_20] : memref<17x512xf32, #tpu.memory_space<vmem>>, vector<1x512xf32>
    %44 = vector.broadcast %43 : vector<1x512xf32> to vector<8x512xf32>
    %45 = arith.mulf %42, %44 : vector<8x512xf32>
    %c72 = arith.constant 72 : index
    %c0_21 = arith.constant 0 : index
    %46 = vector.load %arg9[%c72, %c0_21] : memref<136x512xf32, #tpu.memory_space<vmem>>, vector<8x512xf32>
    tpu.vector_store %arg9[%c72, %c0_21], %45 {strides = array<i32>} : memref<136x512xf32, #tpu.memory_space<vmem>>, vector<8x512xf32>,
    %c192_i32 = arith.constant 192 : i32
    %47 = tpu.dynamic_rotate %0 by %c192_i32 dim 1 : vector<8x512xf32>, i32 -> vector<8x512xf32>
    %c10 = arith.constant 10 : index
    %c0_22 = arith.constant 0 : index
    %48 = vector.load %arg2[%c10, %c0_22] : memref<17x512xf32, #tpu.memory_space<vmem>>, vector<1x512xf32>
    %49 = vector.broadcast %48 : vector<1x512xf32> to vector<8x512xf32>
    %50 = arith.mulf %47, %49 : vector<8x512xf32>
    %c80 = arith.constant 80 : index
    %c0_23 = arith.constant 0 : index
    %51 = vector.load %arg9[%c80, %c0_23] : memref<136x512xf32, #tpu.memory_space<vmem>>, vector<8x512xf32>
    tpu.vector_store %arg9[%c80, %c0_23], %50 {strides = array<i32>} : memref<136x512xf32, #tpu.memory_space<vmem>>, vector<8x512xf32>,
    %c180_i32 = arith.constant 180 : i32
    %52 = tpu.dynamic_rotate %0 by %c180_i32 dim 1 : vector<8x512xf32>, i32 -> vector<8x512xf32>
    %c11 = arith.constant 11 : index
    %c0_24 = arith.constant 0 : index
    %53 = vector.load %arg2[%c11, %c0_24] : memref<17x512xf32, #tpu.memory_space<vmem>>, vector<1x512xf32>
    %54 = vector.broadcast %53 : vector<1x512xf32> to vector<8x512xf32>
    %55 = arith.mulf %52, %54 : vector<8x512xf32>
    %c88 = arith.constant 88 : index
    %c0_25 = arith.constant 0 : index
    %56 = vector.load %arg9[%c88, %c0_25] : memref<136x512xf32, #tpu.memory_space<vmem>>, vector<8x512xf32>
    tpu.vector_store %arg9[%c88, %c0_25], %55 {strides = array<i32>} : memref<136x512xf32, #tpu.memory_space<vmem>>, vector<8x512xf32>,
    %c12_i32 = arith.constant 12 : i32
    %57 = tpu.dynamic_rotate %0 by %c12_i32 dim 1 : vector<8x512xf32>, i32 -> vector<8x512xf32>
    %c12 = arith.constant 12 : index
    %c0_26 = arith.constant 0 : index
    %58 = vector.load %arg2[%c12, %c0_26] : memref<17x512xf32, #tpu.memory_space<vmem>>, vector<1x512xf32>
    %59 = vector.broadcast %58 : vector<1x512xf32> to vector<8x512xf32>
    %60 = arith.mulf %57, %59 : vector<8x512xf32>
    %c96 = arith.constant 96 : index
    %c0_27 = arith.constant 0 : index
    %61 = vector.load %arg9[%c96, %c0_27] : memref<136x512xf32, #tpu.memory_space<vmem>>, vector<8x512xf32>
    tpu.vector_store %arg9[%c96, %c0_27], %60 {strides = array<i32>} : memref<136x512xf32, #tpu.memory_space<vmem>>, vector<8x512xf32>,
    %c500_i32 = arith.constant 500 : i32
    %62 = tpu.dynamic_rotate %0 by %c500_i32 dim 1 : vector<8x512xf32>, i32 -> vector<8x512xf32>
    %c13 = arith.constant 13 : index
    %c0_28 = arith.constant 0 : index
    %63 = vector.load %arg2[%c13, %c0_28] : memref<17x512xf32, #tpu.memory_space<vmem>>, vector<1x512xf32>
    %64 = vector.broadcast %63 : vector<1x512xf32> to vector<8x512xf32>
    %65 = arith.mulf %62, %64 : vector<8x512xf32>
    %c104 = arith.constant 104 : index
    %c0_29 = arith.constant 0 : index
    %66 = vector.load %arg9[%c104, %c0_29] : memref<136x512xf32, #tpu.memory_space<vmem>>, vector<8x512xf32>
    tpu.vector_store %arg9[%c104, %c0_29], %65 {strides = array<i32>} : memref<136x512xf32, #tpu.memory_space<vmem>>, vector<8x512xf32>,
    %c332_i32 = arith.constant 332 : i32
    %67 = tpu.dynamic_rotate %0 by %c332_i32 dim 1 : vector<8x512xf32>, i32 -> vector<8x512xf32>
    %c14 = arith.constant 14 : index
    %c0_30 = arith.constant 0 : index
    %68 = vector.load %arg2[%c14, %c0_30] : memref<17x512xf32, #tpu.memory_space<vmem>>, vector<1x512xf32>
    %69 = vector.broadcast %68 : vector<1x512xf32> to vector<8x512xf32>
    %70 = arith.mulf %67, %69 : vector<8x512xf32>
    %c112 = arith.constant 112 : index
    %c0_31 = arith.constant 0 : index
    %71 = vector.load %arg9[%c112, %c0_31] : memref<136x512xf32, #tpu.memory_space<vmem>>, vector<8x512xf32>
    tpu.vector_store %arg9[%c112, %c0_31], %70 {strides = array<i32>} : memref<136x512xf32, #tpu.memory_space<vmem>>, vector<8x512xf32>,
    %c320_i32 = arith.constant 320 : i32
    %72 = tpu.dynamic_rotate %0 by %c320_i32 dim 1 : vector<8x512xf32>, i32 -> vector<8x512xf32>
    %c15 = arith.constant 15 : index
    %c0_32 = arith.constant 0 : index
    %73 = vector.load %arg2[%c15, %c0_32] : memref<17x512xf32, #tpu.memory_space<vmem>>, vector<1x512xf32>
    %74 = vector.broadcast %73 : vector<1x512xf32> to vector<8x512xf32>
    %75 = arith.mulf %72, %74 : vector<8x512xf32>
    %c120 = arith.constant 120 : index
    %c0_33 = arith.constant 0 : index
    %76 = vector.load %arg9[%c120, %c0_33] : memref<136x512xf32, #tpu.memory_space<vmem>>, vector<8x512xf32>
    tpu.vector_store %arg9[%c120, %c0_33], %75 {strides = array<i32>} : memref<136x512xf32, #tpu.memory_space<vmem>>, vector<8x512xf32>,
    %c308_i32 = arith.constant 308 : i32
    %77 = tpu.dynamic_rotate %0 by %c308_i32 dim 1 : vector<8x512xf32>, i32 -> vector<8x512xf32>
    %c16_34 = arith.constant 16 : index
    %c0_35 = arith.constant 0 : index
    %78 = vector.load %arg2[%c16_34, %c0_35] : memref<17x512xf32, #tpu.memory_space<vmem>>, vector<1x512xf32>
    %79 = vector.broadcast %78 : vector<1x512xf32> to vector<8x512xf32>
    %80 = arith.mulf %77, %79 : vector<8x512xf32>
    %c128 = arith.constant 128 : index
    %c0_36 = arith.constant 0 : index
    %81 = vector.load %arg9[%c128, %c0_36] : memref<136x512xf32, #tpu.memory_space<vmem>>, vector<8x512xf32>
    tpu.vector_store %arg9[%c128, %c0_36], %80 {strides = array<i32>} : memref<136x512xf32, #tpu.memory_space<vmem>>, vector<8x512xf32>,
    %c0_37 = arith.constant 0 : index
    %c0_38 = arith.constant 0 : index
    %82 = vector.load %arg3[%c0_37, %c0_38] : memref<16x136xf32, #tpu.memory_space<vmem>>, vector<16x136xf32>
    %c0_39 = arith.constant 0 : index
    %c0_40 = arith.constant 0 : index
    %83 = vector.load %arg9[%c0_39, %c0_40] : memref<136x512xf32, #tpu.memory_space<vmem>>, vector<136x512xf32>
    %cst = arith.constant dense<0.000000e+00> : vector<16x512xf32>
    %84 = tpu.matmul %82, %83, %cst {dimension_numbers = #tpu.dot_dimension_numbers<[1], [0], [0], [1], [0, 0, 1, 1], [], []>} : vector<16x136xf32>, vector<136x512xf32>, vector<16x512xf32> -> vector<16x512xf32>
    %c0_41 = arith.constant 0 : index
    %c0_42 = arith.constant 0 : index
    %85 = vector.load %arg4[%c0_41, %c0_42] : memref<16x1xf32, #tpu.memory_space<vmem>>, vector<16x1xf32>
    %86 = vector.broadcast %85 : vector<16x1xf32> to vector<16x512xf32>
    %87 = arith.addf %84, %86 : vector<16x512xf32>
    %cst_43 = arith.constant 0.000000e+00 : f32
    %88 = vector.broadcast %cst_43 : f32 to vector<16x512xf32>
    %89 = arith.maximumf %87, %88 : vector<16x512xf32>
    %c17_i32 = arith.constant 17 : i32
    %90 = tpu.dynamic_rotate %89 by %c17_i32 dim 1 : vector<16x512xf32>, i32 -> vector<16x512xf32>
    %c0_44 = arith.constant 0 : index
    %c0_45 = arith.constant 0 : index
    %91 = vector.load %arg5[%c0_44, %c0_45] : memref<9x512xf32, #tpu.memory_space<vmem>>, vector<1x512xf32>
    %92 = vector.broadcast %91 : vector<1x512xf32> to vector<16x512xf32>
    %93 = arith.mulf %90, %92 : vector<16x512xf32>
    %c0_46 = arith.constant 0 : index
    %c0_47 = arith.constant 0 : index
    %94 = vector.load %arg10[%c0_46, %c0_47] : memref<144x512xf32, #tpu.memory_space<vmem>>, vector<16x512xf32>
    tpu.vector_store %arg10[%c0_46, %c0_47], %93 {strides = array<i32>} : memref<144x512xf32, #tpu.memory_space<vmem>>, vector<16x512xf32>,
    %c16_i32 = arith.constant 16 : i32
    %95 = tpu.dynamic_rotate %89 by %c16_i32 dim 1 : vector<16x512xf32>, i32 -> vector<16x512xf32>
    %c1_48 = arith.constant 1 : index
    %c0_49 = arith.constant 0 : index
    %96 = vector.load %arg5[%c1_48, %c0_49] : memref<9x512xf32, #tpu.memory_space<vmem>>, vector<1x512xf32>
    %97 = vector.broadcast %96 : vector<1x512xf32> to vector<16x512xf32>
    %98 = arith.mulf %95, %97 : vector<16x512xf32>
    %c16_50 = arith.constant 16 : index
    %c0_51 = arith.constant 0 : index
    %99 = vector.load %arg10[%c16_50, %c0_51] : memref<144x512xf32, #tpu.memory_space<vmem>>, vector<16x512xf32>
    tpu.vector_store %arg10[%c16_50, %c0_51], %98 {strides = array<i32>} : memref<144x512xf32, #tpu.memory_space<vmem>>, vector<16x512xf32>,
    %c15_i32 = arith.constant 15 : i32
    %100 = tpu.dynamic_rotate %89 by %c15_i32 dim 1 : vector<16x512xf32>, i32 -> vector<16x512xf32>
    %c2_52 = arith.constant 2 : index
    %c0_53 = arith.constant 0 : index
    %101 = vector.load %arg5[%c2_52, %c0_53] : memref<9x512xf32, #tpu.memory_space<vmem>>, vector<1x512xf32>
    %102 = vector.broadcast %101 : vector<1x512xf32> to vector<16x512xf32>
    %103 = arith.mulf %100, %102 : vector<16x512xf32>
    %c32_54 = arith.constant 32 : index
    %c0_55 = arith.constant 0 : index
    %104 = vector.load %arg10[%c32_54, %c0_55] : memref<144x512xf32, #tpu.memory_space<vmem>>, vector<16x512xf32>
    tpu.vector_store %arg10[%c32_54, %c0_55], %103 {strides = array<i32>} : memref<144x512xf32, #tpu.memory_space<vmem>>, vector<16x512xf32>,
    %c1_i32 = arith.constant 1 : i32
    %105 = tpu.dynamic_rotate %89 by %c1_i32 dim 1 : vector<16x512xf32>, i32 -> vector<16x512xf32>
    %c3_56 = arith.constant 3 : index
    %c0_57 = arith.constant 0 : index
    %106 = vector.load %arg5[%c3_56, %c0_57] : memref<9x512xf32, #tpu.memory_space<vmem>>, vector<1x512xf32>
    %107 = vector.broadcast %106 : vector<1x512xf32> to vector<16x512xf32>
    %108 = arith.mulf %105, %107 : vector<16x512xf32>
    %c48_58 = arith.constant 48 : index
    %c0_59 = arith.constant 0 : index
    %109 = vector.load %arg10[%c48_58, %c0_59] : memref<144x512xf32, #tpu.memory_space<vmem>>, vector<16x512xf32>
    tpu.vector_store %arg10[%c48_58, %c0_59], %108 {strides = array<i32>} : memref<144x512xf32, #tpu.memory_space<vmem>>, vector<16x512xf32>,
    %c64_60 = arith.constant 64 : index
    %c0_61 = arith.constant 0 : index
    %110 = vector.load %arg10[%c64_60, %c0_61] : memref<144x512xf32, #tpu.memory_space<vmem>>, vector<16x512xf32>
    tpu.vector_store %arg10[%c64_60, %c0_61], %89 {strides = array<i32>} : memref<144x512xf32, #tpu.memory_space<vmem>>, vector<16x512xf32>,
    %c511_i32 = arith.constant 511 : i32
    %111 = tpu.dynamic_rotate %89 by %c511_i32 dim 1 : vector<16x512xf32>, i32 -> vector<16x512xf32>
    %c5_62 = arith.constant 5 : index
    %c0_63 = arith.constant 0 : index
    %112 = vector.load %arg5[%c5_62, %c0_63] : memref<9x512xf32, #tpu.memory_space<vmem>>, vector<1x512xf32>
    %113 = vector.broadcast %112 : vector<1x512xf32> to vector<16x512xf32>
    %114 = arith.mulf %111, %113 : vector<16x512xf32>
    %c80_64 = arith.constant 80 : index
    %c0_65 = arith.constant 0 : index
    %115 = vector.load %arg10[%c80_64, %c0_65] : memref<144x512xf32, #tpu.memory_space<vmem>>, vector<16x512xf32>
    tpu.vector_store %arg10[%c80_64, %c0_65], %114 {strides = array<i32>} : memref<144x512xf32, #tpu.memory_space<vmem>>, vector<16x512xf32>,
    %c497_i32 = arith.constant 497 : i32
    %116 = tpu.dynamic_rotate %89 by %c497_i32 dim 1 : vector<16x512xf32>, i32 -> vector<16x512xf32>
    %c6_66 = arith.constant 6 : index
    %c0_67 = arith.constant 0 : index
    %117 = vector.load %arg5[%c6_66, %c0_67] : memref<9x512xf32, #tpu.memory_space<vmem>>, vector<1x512xf32>
    %118 = vector.broadcast %117 : vector<1x512xf32> to vector<16x512xf32>
    %119 = arith.mulf %116, %118 : vector<16x512xf32>
    %c96_68 = arith.constant 96 : index
    %c0_69 = arith.constant 0 : index
    %120 = vector.load %arg10[%c96_68, %c0_69] : memref<144x512xf32, #tpu.memory_space<vmem>>, vector<16x512xf32>
    tpu.vector_store %arg10[%c96_68, %c0_69], %119 {strides = array<i32>} : memref<144x512xf32, #tpu.memory_space<vmem>>, vector<16x512xf32>,
    %c496_i32 = arith.constant 496 : i32
    %121 = tpu.dynamic_rotate %89 by %c496_i32 dim 1 : vector<16x512xf32>, i32 -> vector<16x512xf32>
    %c7_70 = arith.constant 7 : index
    %c0_71 = arith.constant 0 : index
    %122 = vector.load %arg5[%c7_70, %c0_71] : memref<9x512xf32, #tpu.memory_space<vmem>>, vector<1x512xf32>
    %123 = vector.broadcast %122 : vector<1x512xf32> to vector<16x512xf32>
    %124 = arith.mulf %121, %123 : vector<16x512xf32>
    %c112_72 = arith.constant 112 : index
    %c0_73 = arith.constant 0 : index
    %125 = vector.load %arg10[%c112_72, %c0_73] : memref<144x512xf32, #tpu.memory_space<vmem>>, vector<16x512xf32>
    tpu.vector_store %arg10[%c112_72, %c0_73], %124 {strides = array<i32>} : memref<144x512xf32, #tpu.memory_space<vmem>>, vector<16x512xf32>,
    %c495_i32 = arith.constant 495 : i32
    %126 = tpu.dynamic_rotate %89 by %c495_i32 dim 1 : vector<16x512xf32>, i32 -> vector<16x512xf32>
    %c8_74 = arith.constant 8 : index
    %c0_75 = arith.constant 0 : index
    %127 = vector.load %arg5[%c8_74, %c0_75] : memref<9x512xf32, #tpu.memory_space<vmem>>, vector<1x512xf32>
    %128 = vector.broadcast %127 : vector<1x512xf32> to vector<16x512xf32>
    %129 = arith.mulf %126, %128 : vector<16x512xf32>
    %c128_76 = arith.constant 128 : index
    %c0_77 = arith.constant 0 : index
    %130 = vector.load %arg10[%c128_76, %c0_77] : memref<144x512xf32, #tpu.memory_space<vmem>>, vector<16x512xf32>
    tpu.vector_store %arg10[%c128_76, %c0_77], %129 {strides = array<i32>} : memref<144x512xf32, #tpu.memory_space<vmem>>, vector<16x512xf32>,
    %c0_78 = arith.constant 0 : index
    %c0_79 = arith.constant 0 : index
    %131 = vector.load %arg6[%c0_78, %c0_79] : memref<4x144xf32, #tpu.memory_space<vmem>>, vector<4x144xf32>
    %c0_80 = arith.constant 0 : index
    %c0_81 = arith.constant 0 : index
    %132 = vector.load %arg10[%c0_80, %c0_81] : memref<144x512xf32, #tpu.memory_space<vmem>>, vector<144x512xf32>
    %cst_82 = arith.constant dense<0.000000e+00> : vector<4x512xf32>
    %133 = tpu.matmul %131, %132, %cst_82 {dimension_numbers = #tpu.dot_dimension_numbers<[1], [0], [0], [1], [0, 0, 1, 1], [], []>} : vector<4x144xf32>, vector<144x512xf32>, vector<4x512xf32> -> vector<4x512xf32>
    %c0_83 = arith.constant 0 : index
    %c0_84 = arith.constant 0 : index
    %134 = vector.load %arg7[%c0_83, %c0_84] : memref<4x1xf32, #tpu.memory_space<vmem>>, vector<4x1xf32>
    %135 = vector.broadcast %134 : vector<4x1xf32> to vector<4x512xf32>
    %136 = arith.addf %133, %135 : vector<4x512xf32>
    %cst_85 = arith.constant 0.000000e+00 : f32
    %137 = vector.broadcast %cst_85 : f32 to vector<4x512xf32>
    %138 = arith.maximumf %136, %137 : vector<4x512xf32>
    %c0_86 = arith.constant 0 : index
    %c0_87 = arith.constant 0 : index
    %139 = vector.load %arg8[%c0_86, %c0_87] : memref<4x512xf32, #tpu.memory_space<vmem>>, vector<4x512xf32>
    tpu.vector_store %arg8[%c0_86, %c0_87], %138 {strides = array<i32>} : memref<4x512xf32, #tpu.memory_space<vmem>>, vector<4x512xf32>,
    return
  }
  func.func @transform_0(%arg0: i32) -> (i32, i32) {
    %c0_i32 = arith.constant 0 : i32
    %c0_i32_0 = arith.constant 0 : i32
    return %c0_i32, %arg0 : i32, i32
  }
  func.func @transform_1(%arg0: i32) -> (i32, i32) {
    %c0_i32 = arith.constant 0 : i32
    %c0_i32_0 = arith.constant 0 : i32
    %c0_i32_1 = arith.constant 0 : i32
    return %c0_i32, %c0_i32_0 : i32, i32
  }
  func.func @transform_2(%arg0: i32) -> (i32, i32) {
    %c0_i32 = arith.constant 0 : i32
    %c0_i32_0 = arith.constant 0 : i32
    %c0_i32_1 = arith.constant 0 : i32
    return %c0_i32, %c0_i32_0 : i32, i32
  }
  func.func @transform_3(%arg0: i32) -> (i32, i32) {
    %c0_i32 = arith.constant 0 : i32
    %c0_i32_0 = arith.constant 0 : i32
    %c0_i32_1 = arith.constant 0 : i32
    return %c0_i32, %c0_i32_0 : i32, i32
  }
  func.func @transform_4(%arg0: i32) -> (i32, i32) {
    %c0_i32 = arith.constant 0 : i32
    %c0_i32_0 = arith.constant 0 : i32
    %c0_i32_1 = arith.constant 0 : i32
    return %c0_i32, %c0_i32_0 : i32, i32
  }
  func.func @transform_5(%arg0: i32) -> (i32, i32) {
    %c0_i32 = arith.constant 0 : i32
    %c0_i32_0 = arith.constant 0 : i32
    %c0_i32_1 = arith.constant 0 : i32
    return %c0_i32, %c0_i32_0 : i32, i32
  }
  func.func @transform_6(%arg0: i32) -> (i32, i32) {
    %c0_i32 = arith.constant 0 : i32
    %c0_i32_0 = arith.constant 0 : i32
    %c0_i32_1 = arith.constant 0 : i32
    return %c0_i32, %c0_i32_0 : i32, i32
  }
  func.func @transform_7(%arg0: i32) -> (i32, i32) {
    %c0_i32 = arith.constant 0 : i32
    %c0_i32_0 = arith.constant 0 : i32
    return %c0_i32, %arg0 : i32, i32
  }
}

</mosaic_0001>

<llo_original>
// kernel: tpu_custom_call.1
$region0: #{tpu_custom_call.1}
  #allocation0 [shape = 'u32[]', space=smem, size = 0x4, offset = 0x4, fixed_abs, tag = 'smem constant byte address 0x4 - core index']
  #allocation1 [shape = 'u32[144,128]{1,0:T(1,128)}', space=vmem, size = 0x12000, scoped, tag = 'internal scratch']
  #allocation2 [shape = 'f32[136,512]{1,0:T(8,128)}', space=vmem, size = 0x44000, scoped, tag = 'scratch operand']
  #allocation3 [shape = 'f32[144,512]{1,0:T(8,128)}', space=vmem, size = 0x48000, scoped, tag = 'scratch operand']
  %s0 = inlined_call_operand.hbm [shape: f32[8,512], index: 0, kind: input, shape index: {}]
  %s1 = inlined_call_operand.hbm [shape: f32[17,512], index: 1, kind: input, shape index: {}]
  %s2 = inlined_call_operand.hbm [shape: f32[16,136], index: 2, kind: input, shape index: {}]
  %s3 = inlined_call_operand.vmem [shape: f32[16,1], index: 3, kind: input, shape index: {}]
  %s4 = inlined_call_operand.hbm [shape: f32[9,512], index: 4, kind: input, shape index: {}]
  %s5 = inlined_call_operand.vmem [shape: f32[4,144], index: 5, kind: input, shape index: {}]
  %s6 = inlined_call_operand.vmem [shape: f32[4,1], index: 6, kind: input, shape index: {}]
  %s7 = inlined_call_operand.hbm [shape: f32[4,512], index: 7, kind: output, shape index: {}]
  %s8 = sld [smem:[#allocation0]]
  $region54: #{tpu_custom_call.1} parent=0
    _
  %s10 = ssub.s32 1, %s8
  %s11 = scalar_select 0, %s10, %s8
  $region1: #{tpu_custom_call.1} parent=0
    #allocation4 [shape = 'u8[16384]{0}', space=vmem, size = 0x4000, scoped, tag = 'input window, operand 0, single buffered']
    #allocation5 [shape = 's32[1]{0}', space=sflag, size = 0x4, scoped, tag = 'scoped memory for tpu_custom_call.1']
    #allocation6 [shape = 's32[1]{0}', space=sflag, size = 0x4, scoped, tag = 'scoped memory for tpu_custom_call.1']
    #allocation7 [shape = 'u8[49152]{0}', space=vmem, size = 0xc000, scoped, tag = 'input window, operand 1, single buffered']
    #allocation8 [shape = 's32[1]{0}', space=sflag, size = 0x4, scoped, tag = 'scoped memory for tpu_custom_call.1']
    #allocation9 [shape = 'u8[16384]{0}', space=vmem, size = 0x4000, scoped, tag = 'input window, operand 2, single buffered']
    #allocation10 [shape = 'u8[32768]{0}', space=vmem, size = 0x8000, scoped, tag = 'input window, operand 4, single buffered']
    #allocation11 [shape = 's32[1]{0}', space=sflag, size = 0x4, scoped, tag = 'scoped memory for tpu_custom_call.1']
    #allocation12 [shape = 'u8[8192]{0}', space=vmem, size = 0x2000, scoped, tag = 'output window, operand 0, single buffered']
    %12 = vsyncpa [#allocation5], 0
    %13 = vsyncpa [#allocation8], 0
    %14 = vsyncpa [#allocation11], 0
    %15 = vsyncpa [#allocation6], 0
    // Predicated region
    $region2: #{tpu_custom_call.1} parent=1 // pred_check
      _
    $region3: #{tpu_custom_call.1} parent=1 // pred_check_branch
      %17 = sbr.rel (0) target = $region5
    $region4: #{tpu_custom_call.1} parent=1 // pred_region
      %s19 = ssub.s32 512, 512
      %20 = vsyncadd [#allocation5], %s19
      %s22 = sshll.u32 [#allocation4], 4
      %s23 = int_to_ptr.vmem [resolvable:$true] %s22
      %25 = dma.hbm_to_vmem [thread:$0]  %s0, 512, %s23, [#allocation5]
    $region5: #{tpu_custom_call.1} parent=1 // pred_fallthru
      _
    // Predicated region
    $region6: #{tpu_custom_call.1} parent=1 // pred_check
      _
    $region7: #{tpu_custom_call.1} parent=1 // pred_check_branch
      %27 = sbr.rel (0) target = $region9
    $region8: #{tpu_custom_call.1} parent=1 // pred_region
      %s29 = ssub.s32 1536, 1536
      %30 = vsyncadd [#allocation8], %s29
      %s31 = sshll.u32 [#allocation7], 4
      %s32 = int_to_ptr.vmem [resolvable:$true] %s31
      %37 = dma.hbm_to_vmem [thread:$0]  %s1, 1536, %s32, [#allocation8], 512, 512, 32
    $region9: #{tpu_custom_call.1} parent=1 // pred_fallthru
      _
    // Predicated region
    $region10: #{tpu_custom_call.1} parent=1 // pred_check
      _
    $region11: #{tpu_custom_call.1} parent=1 // pred_check_branch
      %39 = sbr.rel (0) target = $region13
    $region12: #{tpu_custom_call.1} parent=1 // pred_region
      %s41 = ssub.s32 512, 512
      %42 = vsyncadd [#allocation8], %s41
      %s43 = sshll.u32 [#allocation9], 4
      %s44 = int_to_ptr.vmem [resolvable:$true] %s43
      %49 = dma.hbm_to_vmem [thread:$0]  %s2, 512, %s44, [#allocation8], 256, 256, 16
    $region13: #{tpu_custom_call.1} parent=1 // pred_fallthru
      _
    // Predicated region
    $region14: #{tpu_custom_call.1} parent=1 // pred_check
      _
    $region15: #{tpu_custom_call.1} parent=1 // pred_check_branch
      %51 = sbr.rel (0) target = $region17
    $region16: #{tpu_custom_call.1} parent=1 // pred_region
      _
    $region17: #{tpu_custom_call.1} parent=1 // pred_fallthru
      _
    // Predicated region
    $region18: #{tpu_custom_call.1} parent=1 // pred_check
      _
    $region19: #{tpu_custom_call.1} parent=1 // pred_check_branch
      %53 = sbr.rel (0) target = $region21
    $region20: #{tpu_custom_call.1} parent=1 // pred_region
      %s55 = ssub.s32 1024, 1024
      %56 = vsyncadd [#allocation11], %s55
      %s57 = sshll.u32 [#allocation10], 4
      %s58 = int_to_ptr.vmem [resolvable:$true] %s57
      %63 = dma.hbm_to_vmem [thread:$0]  %s4, 1024, %s58, [#allocation11], 512, 512, 32
    $region21: #{tpu_custom_call.1} parent=1 // pred_fallthru
      _
    // Predicated region
    $region22: #{tpu_custom_call.1} parent=1 // pred_check
      _
    $region23: #{tpu_custom_call.1} parent=1 // pred_check_branch
      %65 = sbr.rel (0) target = $region25
    $region24: #{tpu_custom_call.1} parent=1 // pred_region
      _
    $region25: #{tpu_custom_call.1} parent=1 // pred_fallthru
      _
    // Predicated region
    $region26: #{tpu_custom_call.1} parent=1 // pred_check
      _
    $region27: #{tpu_custom_call.1} parent=1 // pred_check_branch
      %67 = sbr.rel (0) target = $region29
    $region28: #{tpu_custom_call.1} parent=1 // pred_region
      _
    $region29: #{tpu_custom_call.1} parent=1 // pred_fallthru
      _
    // Predicated region
    $region30: #{tpu_custom_call.1} parent=1 // pred_check
      _
    $region31: #{tpu_custom_call.1} parent=1 // pred_check_branch
      %69 = sbr.rel (0) target = $region33
    $region32: #{tpu_custom_call.1} parent=1 // pred_region
      %70 = dma.done [#allocation5], 512
    $region33: #{tpu_custom_call.1} parent=1 // pred_fallthru
      _
    // Predicated region
    $region34: #{tpu_custom_call.1} parent=1 // pred_check
      _
    $region35: #{tpu_custom_call.1} parent=1 // pred_check_branch
      %72 = sbr.rel (0) target = $region37
    $region36: #{tpu_custom_call.1} parent=1 // pred_region
      %73 = dma.done [#allocation8], 1536
    $region37: #{tpu_custom_call.1} parent=1 // pred_fallthru
      _
    // Predicated region
    $region38: #{tpu_custom_call.1} parent=1 // pred_check
      _
    $region39: #{tpu_custom_call.1} parent=1 // pred_check_branch
      %75 = sbr.rel (0) target = $region41
    $region40: #{tpu_custom_call.1} parent=1 // pred_region
      %76 = dma.done [#allocation8], 512
    $region41: #{tpu_custom_call.1} parent=1 // pred_fallthru
      _
    // Predicated region
    $region42: #{tpu_custom_call.1} parent=1 // pred_check
      _
    $region43: #{tpu_custom_call.1} parent=1 // pred_check_branch
      %78 = sbr.rel (0) target = $region45
    $region44: #{tpu_custom_call.1} parent=1 // pred_region
      %79 = dma.done [#allocation11], 1024
    $region45: #{tpu_custom_call.1} parent=1 // pred_fallthru
      _
    %v80 = vld [vmem:[#allocation4] sm:$0xff]
    %v81 = vld [vmem:[#allocation4 + $0x8] sm:$0xff]
    %v82 = vld [vmem:[#allocation4 + $0x10] sm:$0xff]
    %v83 = vld [vmem:[#allocation4 + $0x18] sm:$0xff]
    %84 = vst [vmem:[#allocation2] sm:$0xff] %v80
    %85 = vst [vmem:[#allocation2 + $0x8] sm:$0xff] %v81
    %86 = vst [vmem:[#allocation2 + $0x10] sm:$0xff] %v82
    %87 = vst [vmem:[#allocation2 + $0x18] sm:$0xff] %v83
    %88 = vrot.lane.b32.xlu0 %v80, 8
    %v89 = vpop.permute.xlu0 %88
    %90 = vrot.lane.b32.xlu0 %v81, 8
    %v91 = vpop.permute.xlu0 %90
    %92 = vrot.lane.b32.xlu0 %v82, 8
    %v93 = vpop.permute.xlu0 %92
    %94 = vrot.lane.b32.xlu0 %v83, 8
    %v95 = vpop.permute.xlu0 %94
    %v96 = vlaneseq
    %v97 = vand.u32 %v96, 127
    %vm98 = vcmp.lt.s32.totalorder %v97, 8
    %v99 = vsel %vm98, %v93, %v95
    %v100 = vsel %vm98, %v91, %v93
    %v101 = vsel %vm98, %v89, %v91
    %v102 = vsel %vm98, %v95, %v89
    %s103 = scalar_lea.vmem [#allocation7], 1
    %v104 = vld [vmem:[%s103] ss:$8 sm:$0xf]
    %v106 = vlaneseq
    %v107 = vshrl.u32 %v106, 7
    %v108 = vsub.s32 0, %v107
    %v109 = vrot.slane %v104, %v108
    %v110 = vlaneseq
    %v111 = vshrl.u32 %v110, 7
    %v112 = vsub.s32 1, %v111
    %v113 = vrot.slane %v104, %v112
    %v114 = vlaneseq
    %v115 = vshrl.u32 %v114, 7
    %v116 = vsub.s32 2, %v115
    %v117 = vrot.slane %v104, %v116
    %v118 = vlaneseq
    %v119 = vshrl.u32 %v118, 7
    %v120 = vsub.s32 3, %v119
    %v121 = vrot.slane %v104, %v120
    %v126 = vmul.f32 %v99, %v109
    %v127 = vmul.f32 %v102, %v113
    %v128 = vmul.f32 %v101, %v117
    %v129 = vmul.f32 %v100, %v121
    %130 = vst [vmem:[#allocation2 + $0x20] sm:$0xff] %v126
    %131 = vst [vmem:[#allocation2 + $0x28] sm:$0xff] %v127
    %132 = vst [vmem:[#allocation2 + $0x30] sm:$0xff] %v128
    %133 = vst [vmem:[#allocation2 + $0x38] sm:$0xff] %v129
    %s134 = scalar_lea.vmem [#allocation7], 2
    %v135 = vld [vmem:[%s134] ss:$8 sm:$0xf]
    %v137 = vlaneseq
    %v138 = vshrl.u32 %v137, 7
    %v139 = vsub.s32 0, %v138
    %v140 = vrot.slane %v135, %v139
    %v141 = vlaneseq
    %v142 = vshrl.u32 %v141, 7
    %v143 = vsub.s32 1, %v142
    %v144 = vrot.slane %v135, %v143
    %v145 = vlaneseq
    %v146 = vshrl.u32 %v145, 7
    %v147 = vsub.s32 2, %v146
    %v148 = vrot.slane %v135, %v147
    %v149 = vlaneseq
    %v150 = vshrl.u32 %v149, 7
    %v151 = vsub.s32 3, %v150
    %v152 = vrot.slane %v135, %v151
    %v157 = vmul.f32 %v83, %v140
    %v158 = vmul.f32 %v80, %v144
    %v159 = vmul.f32 %v81, %v148
    %v160 = vmul.f32 %v82, %v152
    %161 = vst [vmem:[#allocation2 + $0x40] sm:$0xff] %v157
    %162 = vst [vmem:[#allocation2 + $0x48] sm:$0xff] %v158
    %163 = vst [vmem:[#allocation2 + $0x50] sm:$0xff] %v159
    %164 = vst [vmem:[#allocation2 + $0x58] sm:$0xff] %v160
    %165 = vrot.lane.b32.xlu0 %v80, 120
    %v166 = vpop.permute.xlu0 %165
    %167 = vrot.lane.b32.xlu0 %v81, 120
    %v168 = vpop.permute.xlu0 %167
    %169 = vrot.lane.b32.xlu0 %v82, 120
    %v170 = vpop.permute.xlu0 %169
    %171 = vrot.lane.b32.xlu0 %v83, 120
    %v172 = vpop.permute.xlu0 %171
    %vm173 = vcmp.lt.s32.totalorder %v97, 120
    %v174 = vsel %vm173, %v170, %v172
    %v175 = vsel %vm173, %v168, %v170
    %v176 = vsel %vm173, %v166, %v168
    %v177 = vsel %vm173, %v172, %v166
    %s178 = scalar_lea.vmem [#allocation7], 3
    %v179 = vld [vmem:[%s178] ss:$8 sm:$0xf]
    %v181 = vlaneseq
    %v182 = vshrl.u32 %v181, 7
    %v183 = vsub.s32 0, %v182
    %v184 = vrot.slane %v179, %v183
    %v185 = vlaneseq
    %v186 = vshrl.u32 %v185, 7
    %v187 = vsub.s32 1, %v186
    %v188 = vrot.slane %v179, %v187
    %v189 = vlaneseq
    %v190 = vshrl.u32 %v189, 7
    %v191 = vsub.s32 2, %v190
    %v192 = vrot.slane %v179, %v191
    %v193 = vlaneseq
    %v194 = vshrl.u32 %v193, 7
    %v195 = vsub.s32 3, %v194
    %v196 = vrot.slane %v179, %v195
    %v201 = vmul.f32 %v177, %v184
    %v202 = vmul.f32 %v176, %v188
    %v203 = vmul.f32 %v175, %v192
    %v204 = vmul.f32 %v174, %v196
    %205 = vst [vmem:[#allocation2 + $0x60] sm:$0xff] %v201
    %206 = vst [vmem:[#allocation2 + $0x68] sm:$0xff] %v202
    %207 = vst [vmem:[#allocation2 + $0x70] sm:$0xff] %v203
    %208 = vst [vmem:[#allocation2 + $0x78] sm:$0xff] %v204
    %s209 = scalar_lea.vmem [#allocation7], 4
    %v210 = vld [vmem:[%s209] ss:$8 sm:$0xf]
    %v212 = vlaneseq
    %v213 = vshrl.u32 %v212, 7
    %v214 = vsub.s32 0, %v213
    %v215 = vrot.slane %v210, %v214
    %v216 = vlaneseq
    %v217 = vshrl.u32 %v216, 7
    %v218 = vsub.s32 1, %v217
    %v219 = vrot.slane %v210, %v218
    %v220 = vlaneseq
    %v221 = vshrl.u32 %v220, 7
    %v222 = vsub.s32 2, %v221
    %v223 = vrot.slane %v210, %v222
    %v224 = vlaneseq
    %v225 = vshrl.u32 %v224, 7
    %v226 = vsub.s32 3, %v225
    %v227 = vrot.slane %v210, %v226
    %v232 = vmul.f32 %v102, %v215
    %v233 = vmul.f32 %v101, %v219
    %v234 = vmul.f32 %v100, %v223
    %v235 = vmul.f32 %v99, %v227
    %236 = vst [vmem:[#allocation2 + $0x80] sm:$0xff] %v232
    %237 = vst [vmem:[#allocation2 + $0x88] sm:$0xff] %v233
    %238 = vst [vmem:[#allocation2 + $0x90] sm:$0xff] %v234
    %239 = vst [vmem:[#allocation2 + $0x98] sm:$0xff] %v235
    %s240 = scalar_lea.vmem [#allocation7], 5
    %v241 = vld [vmem:[%s240] ss:$8 sm:$0xf]
    %v243 = vlaneseq
    %v244 = vshrl.u32 %v243, 7
    %v245 = vsub.s32 0, %v244
    %v246 = vrot.slane %v241, %v245
    %v247 = vlaneseq
    %v248 = vshrl.u32 %v247, 7
    %v249 = vsub.s32 1, %v248
    %v250 = vrot.slane %v241, %v249
    %v251 = vlaneseq
    %v252 = vshrl.u32 %v251, 7
    %v253 = vsub.s32 2, %v252
    %v254 = vrot.slane %v241, %v253
    %v255 = vlaneseq
    %v256 = vshrl.u32 %v255, 7
    %v257 = vsub.s32 3, %v256
    %v258 = vrot.slane %v241, %v257
    %v263 = vmul.f32 %v176, %v246
    %v264 = vmul.f32 %v175, %v250
    %v265 = vmul.f32 %v174, %v254
    %v266 = vmul.f32 %v177, %v258
    %267 = vst [vmem:[#allocation2 + $0xa0] sm:$0xff] %v263
    %268 = vst [vmem:[#allocation2 + $0xa8] sm:$0xff] %v264
    %269 = vst [vmem:[#allocation2 + $0xb0] sm:$0xff] %v265
    %270 = vst [vmem:[#allocation2 + $0xb8] sm:$0xff] %v266
    %s271 = scalar_lea.vmem [#allocation7], 6
    %v272 = vld [vmem:[%s271] ss:$8 sm:$0xf]
    %v274 = vlaneseq
    %v275 = vshrl.u32 %v274, 7
    %v276 = vsub.s32 0, %v275
    %v277 = vrot.slane %v272, %v276
    %v278 = vlaneseq
    %v279 = vshrl.u32 %v278, 7
    %v280 = vsub.s32 1, %v279
    %v281 = vrot.slane %v272, %v280
    %v282 = vlaneseq
    %v283 = vshrl.u32 %v282, 7
    %v284 = vsub.s32 2, %v283
    %v285 = vrot.slane %v272, %v284
    %v286 = vlaneseq
    %v287 = vshrl.u32 %v286, 7
    %v288 = vsub.s32 3, %v287
    %v289 = vrot.slane %v272, %v288
    %v294 = vmul.f32 %v101, %v277
    %v295 = vmul.f32 %v100, %v281
    %v296 = vmul.f32 %v99, %v285
    %v297 = vmul.f32 %v102, %v289
    %298 = vst [vmem:[#allocation2 + $0xc0] sm:$0xff] %v294
    %299 = vst [vmem:[#allocation2 + $0xc8] sm:$0xff] %v295
    %300 = vst [vmem:[#allocation2 + $0xd0] sm:$0xff] %v296
    %301 = vst [vmem:[#allocation2 + $0xd8] sm:$0xff] %v297
    %s302 = scalar_lea.vmem [#allocation7], 7
    %v303 = vld [vmem:[%s302] ss:$8 sm:$0xf]
    %v305 = vlaneseq
    %v306 = vshrl.u32 %v305, 7
    %v307 = vsub.s32 0, %v306
    %v308 = vrot.slane %v303, %v307
    %v309 = vlaneseq
    %v310 = vshrl.u32 %v309, 7
    %v311 = vsub.s32 1, %v310
    %v312 = vrot.slane %v303, %v311
    %v313 = vlaneseq
    %v314 = vshrl.u32 %v313, 7
    %v315 = vsub.s32 2, %v314
    %v316 = vrot.slane %v303, %v315
    %v317 = vlaneseq
    %v318 = vshrl.u32 %v317, 7
    %v319 = vsub.s32 3, %v318
    %v320 = vrot.slane %v303, %v319
    %v325 = vmul.f32 %v81, %v308
    %v326 = vmul.f32 %v82, %v312
    %v327 = vmul.f32 %v83, %v316
    %v328 = vmul.f32 %v80, %v320
    %329 = vst [vmem:[#allocation2 + $0xe0] sm:$0xff] %v325
    %330 = vst [vmem:[#allocation2 + $0xe8] sm:$0xff] %v326
    %331 = vst [vmem:[#allocation2 + $0xf0] sm:$0xff] %v327
    %332 = vst [vmem:[#allocation2 + $0xf8] sm:$0xff] %v328
    %s333 = scalar_lea.vmem [#allocation7], 32
    %v334 = vld [vmem:[%s333] ss:$8 sm:$0xf]
    %v336 = vlaneseq
    %v337 = vshrl.u32 %v336, 7
    %v338 = vsub.s32 0, %v337
    %v339 = vrot.slane %v334, %v338
    %v340 = vlaneseq
    %v341 = vshrl.u32 %v340, 7
    %v342 = vsub.s32 1, %v341
    %v343 = vrot.slane %v334, %v342
    %v344 = vlaneseq
    %v345 = vshrl.u32 %v344, 7
    %v346 = vsub.s32 2, %v345
    %v347 = vrot.slane %v334, %v346
    %v348 = vlaneseq
    %v349 = vshrl.u32 %v348, 7
    %v350 = vsub.s32 3, %v349
    %v351 = vrot.slane %v334, %v350
    %v356 = vmul.f32 %v175, %v339
    %v357 = vmul.f32 %v174, %v343
    %v358 = vmul.f32 %v177, %v347
    %v359 = vmul.f32 %v176, %v351
    %360 = vst [vmem:[#allocation2 + $0x100] sm:$0xff] %v356
    %361 = vst [vmem:[#allocation2 + $0x108] sm:$0xff] %v357
    %362 = vst [vmem:[#allocation2 + $0x110] sm:$0xff] %v358
    %363 = vst [vmem:[#allocation2 + $0x118] sm:$0xff] %v359
    %364 = vrot.lane.b32.xlu0 %v80, 76
    %v365 = vpop.permute.xlu0 %364
    %366 = vrot.lane.b32.xlu0 %v81, 76
    %v367 = vpop.permute.xlu0 %366
    %368 = vrot.lane.b32.xlu0 %v82, 76
    %v369 = vpop.permute.xlu0 %368
    %370 = vrot.lane.b32.xlu0 %v83, 76
    %v371 = vpop.permute.xlu0 %370
    %vm372 = vcmp.lt.s32.totalorder %v97, 76
    %v373 = vsel %vm372, %v369, %v371
    %v374 = vsel %vm372, %v367, %v369
    %v375 = vsel %vm372, %v365, %v367
    %v376 = vsel %vm372, %v371, %v365
    %s377 = scalar_lea.vmem [#allocation7], 33
    %v378 = vld [vmem:[%s377] ss:$8 sm:$0xf]
    %v380 = vlaneseq
    %v381 = vshrl.u32 %v380, 7
    %v382 = vsub.s32 0, %v381
    %v383 = vrot.slane %v378, %v382
    %v384 = vlaneseq
    %v385 = vshrl.u32 %v384, 7
    %v386 = vsub.s32 1, %v385
    %v387 = vrot.slane %v378, %v386
    %v388 = vlaneseq
    %v389 = vshrl.u32 %v388, 7
    %v390 = vsub.s32 2, %v389
    %v391 = vrot.slane %v378, %v390
    %v392 = vlaneseq
    %v393 = vshrl.u32 %v392, 7
    %v394 = vsub.s32 3, %v393
    %v395 = vrot.slane %v378, %v394
    %v400 = vmul.f32 %v373, %v383
    %v401 = vmul.f32 %v376, %v387
    %v402 = vmul.f32 %v375, %v391
    %v403 = vmul.f32 %v374, %v395
    %404 = vst [vmem:[#allocation2 + $0x120] sm:$0xff] %v400
    %405 = vst [vmem:[#allocation2 + $0x128] sm:$0xff] %v401
    %406 = vst [vmem:[#allocation2 + $0x130] sm:$0xff] %v402
    %407 = vst [vmem:[#allocation2 + $0x138] sm:$0xff] %v403
    %408 = vrot.lane.b32.xlu0 %v80, 64
    %v409 = vpop.permute.xlu0 %408
    %410 = vrot.lane.b32.xlu0 %v81, 64
    %v411 = vpop.permute.xlu0 %410
    %412 = vrot.lane.b32.xlu0 %v82, 64
    %v413 = vpop.permute.xlu0 %412
    %414 = vrot.lane.b32.xlu0 %v83, 64
    %v415 = vpop.permute.xlu0 %414
    %vm416 = vcmp.lt.s32.totalorder %v97, 64
    %v417 = vsel %vm416, %v413, %v415
    %v418 = vsel %vm416, %v411, %v413
    %v419 = vsel %vm416, %v409, %v411
    %v420 = vsel %vm416, %v415, %v409
    %s421 = scalar_lea.vmem [#allocation7], 34
    %v422 = vld [vmem:[%s421] ss:$8 sm:$0xf]
    %v424 = vlaneseq
    %v425 = vshrl.u32 %v424, 7
    %v426 = vsub.s32 0, %v425
    %v427 = vrot.slane %v422, %v426
    %v428 = vlaneseq
    %v429 = vshrl.u32 %v428, 7
    %v430 = vsub.s32 1, %v429
    %v431 = vrot.slane %v422, %v430
    %v432 = vlaneseq
    %v433 = vshrl.u32 %v432, 7
    %v434 = vsub.s32 2, %v433
    %v435 = vrot.slane %v422, %v434
    %v436 = vlaneseq
    %v437 = vshrl.u32 %v436, 7
    %v438 = vsub.s32 3, %v437
    %v439 = vrot.slane %v422, %v438
    %v444 = vmul.f32 %v417, %v427
    %v445 = vmul.f32 %v420, %v431
    %v446 = vmul.f32 %v419, %v435
    %v447 = vmul.f32 %v418, %v439
    %448 = vst [vmem:[#allocation2 + $0x140] sm:$0xff] %v444
    %449 = vst [vmem:[#allocation2 + $0x148] sm:$0xff] %v445
    %450 = vst [vmem:[#allocation2 + $0x150] sm:$0xff] %v446
    %451 = vst [vmem:[#allocation2 + $0x158] sm:$0xff] %v447
    %452 = vrot.lane.b32.xlu0 %v80, 52
    %v453 = vpop.permute.xlu0 %452
    %454 = vrot.lane.b32.xlu0 %v81, 52
    %v455 = vpop.permute.xlu0 %454
    %456 = vrot.lane.b32.xlu0 %v82, 52
    %v457 = vpop.permute.xlu0 %456
    %458 = vrot.lane.b32.xlu0 %v83, 52
    %v459 = vpop.permute.xlu0 %458
    %vm460 = vcmp.lt.s32.totalorder %v97, 52
    %v461 = vsel %vm460, %v457, %v459
    %v462 = vsel %vm460, %v455, %v457
    %v463 = vsel %vm460, %v453, %v455
    %v464 = vsel %vm460, %v459, %v453
    %s465 = scalar_lea.vmem [#allocation7], 35
    %v466 = vld [vmem:[%s465] ss:$8 sm:$0xf]
    %v468 = vlaneseq
    %v469 = vshrl.u32 %v468, 7
    %v470 = vsub.s32 0, %v469
    %v471 = vrot.slane %v466, %v470
    %v472 = vlaneseq
    %v473 = vshrl.u32 %v472, 7
    %v474 = vsub.s32 1, %v473
    %v475 = vrot.slane %v466, %v474
    %v476 = vlaneseq
    %v477 = vshrl.u32 %v476, 7
    %v478 = vsub.s32 2, %v477
    %v479 = vrot.slane %v466, %v478
    %v480 = vlaneseq
    %v481 = vshrl.u32 %v480, 7
    %v482 = vsub.s32 3, %v481
    %v483 = vrot.slane %v466, %v482
    %v488 = vmul.f32 %v461, %v471
    %v489 = vmul.f32 %v464, %v475
    %v490 = vmul.f32 %v463, %v479
    %v491 = vmul.f32 %v462, %v483
    %492 = vst [vmem:[#allocation2 + $0x160] sm:$0xff] %v488
    %493 = vst [vmem:[#allocation2 + $0x168] sm:$0xff] %v489
    %494 = vst [vmem:[#allocation2 + $0x170] sm:$0xff] %v490
    %495 = vst [vmem:[#allocation2 + $0x178] sm:$0xff] %v491
    %496 = vrot.lane.b32.xlu0 %v80, 12
    %v497 = vpop.permute.xlu0 %496
    %498 = vrot.lane.b32.xlu0 %v81, 12
    %v499 = vpop.permute.xlu0 %498
    %500 = vrot.lane.b32.xlu0 %v82, 12
    %v501 = vpop.permute.xlu0 %500
    %502 = vrot.lane.b32.xlu0 %v83, 12
    %v503 = vpop.permute.xlu0 %502
    %vm504 = vcmp.lt.s32.totalorder %v97, 12
    %v505 = vsel %vm504, %v501, %v503
    %v506 = vsel %vm504, %v499, %v501
    %v507 = vsel %vm504, %v497, %v499
    %v508 = vsel %vm504, %v503, %v497
    %s509 = scalar_lea.vmem [#allocation7], 36
    %v510 = vld [vmem:[%s509] ss:$8 sm:$0xf]
    %v512 = vlaneseq
    %v513 = vshrl.u32 %v512, 7
    %v514 = vsub.s32 0, %v513
    %v515 = vrot.slane %v510, %v514
    %v516 = vlaneseq
    %v517 = vshrl.u32 %v516, 7
    %v518 = vsub.s32 1, %v517
    %v519 = vrot.slane %v510, %v518
    %v520 = vlaneseq
    %v521 = vshrl.u32 %v520, 7
    %v522 = vsub.s32 2, %v521
    %v523 = vrot.slane %v510, %v522
    %v524 = vlaneseq
    %v525 = vshrl.u32 %v524, 7
    %v526 = vsub.s32 3, %v525
    %v527 = vrot.slane %v510, %v526
    %v532 = vmul.f32 %v508, %v515
    %v533 = vmul.f32 %v507, %v519
    %v534 = vmul.f32 %v506, %v523
    %v535 = vmul.f32 %v505, %v527
    %536 = vst [vmem:[#allocation2 + $0x180] sm:$0xff] %v532
    %537 = vst [vmem:[#allocation2 + $0x188] sm:$0xff] %v533
    %538 = vst [vmem:[#allocation2 + $0x190] sm:$0xff] %v534
    %539 = vst [vmem:[#allocation2 + $0x198] sm:$0xff] %v535
    %540 = vrot.lane.b32.xlu0 %v80, 116
    %v541 = vpop.permute.xlu0 %540
    %542 = vrot.lane.b32.xlu0 %v81, 116
    %v543 = vpop.permute.xlu0 %542
    %544 = vrot.lane.b32.xlu0 %v82, 116
    %v545 = vpop.permute.xlu0 %544
    %546 = vrot.lane.b32.xlu0 %v83, 116
    %v547 = vpop.permute.xlu0 %546
    %vm548 = vcmp.lt.s32.totalorder %v97, 116
    %v549 = vsel %vm548, %v545, %v547
    %v550 = vsel %vm548, %v543, %v545
    %v551 = vsel %vm548, %v541, %v543
    %v552 = vsel %vm548, %v547, %v541
    %s553 = scalar_lea.vmem [#allocation7], 37
    %v554 = vld [vmem:[%s553] ss:$8 sm:$0xf]
    %v556 = vlaneseq
    %v557 = vshrl.u32 %v556, 7
    %v558 = vsub.s32 0, %v557
    %v559 = vrot.slane %v554, %v558
    %v560 = vlaneseq
    %v561 = vshrl.u32 %v560, 7
    %v562 = vsub.s32 1, %v561
    %v563 = vrot.slane %v554, %v562
    %v564 = vlaneseq
    %v565 = vshrl.u32 %v564, 7
    %v566 = vsub.s32 2, %v565
    %v567 = vrot.slane %v554, %v566
    %v568 = vlaneseq
    %v569 = vshrl.u32 %v568, 7
    %v570 = vsub.s32 3, %v569
    %v571 = vrot.slane %v554, %v570
    %v576 = vmul.f32 %v551, %v559
    %v577 = vmul.f32 %v550, %v563
    %v578 = vmul.f32 %v549, %v567
    %v579 = vmul.f32 %v552, %v571
    %580 = vst [vmem:[#allocation2 + $0x1a0] sm:$0xff] %v576
    %581 = vst [vmem:[#allocation2 + $0x1a8] sm:$0xff] %v577
    %582 = vst [vmem:[#allocation2 + $0x1b0] sm:$0xff] %v578
    %583 = vst [vmem:[#allocation2 + $0x1b8] sm:$0xff] %v579
    %s584 = scalar_lea.vmem [#allocation7], 38
    %v585 = vld [vmem:[%s584] ss:$8 sm:$0xf]
    %v587 = vlaneseq
    %v588 = vshrl.u32 %v587, 7
    %v589 = vsub.s32 0, %v588
    %v590 = vrot.slane %v585, %v589
    %v591 = vlaneseq
    %v592 = vshrl.u32 %v591, 7
    %v593 = vsub.s32 1, %v592
    %v594 = vrot.slane %v585, %v593
    %v595 = vlaneseq
    %v596 = vshrl.u32 %v595, 7
    %v597 = vsub.s32 2, %v596
    %v598 = vrot.slane %v585, %v597
    %v599 = vlaneseq
    %v600 = vshrl.u32 %v599, 7
    %v601 = vsub.s32 3, %v600
    %v602 = vrot.slane %v585, %v601
    %v607 = vmul.f32 %v374, %v590
    %v608 = vmul.f32 %v373, %v594
    %v609 = vmul.f32 %v376, %v598
    %v610 = vmul.f32 %v375, %v602
    %611 = vst [vmem:[#allocation2 + $0x1c0] sm:$0xff] %v607
    %612 = vst [vmem:[#allocation2 + $0x1c8] sm:$0xff] %v608
    %613 = vst [vmem:[#allocation2 + $0x1d0] sm:$0xff] %v609
    %614 = vst [vmem:[#allocation2 + $0x1d8] sm:$0xff] %v610
    %s615 = scalar_lea.vmem [#allocation7], 39
    %v616 = vld [vmem:[%s615] ss:$8 sm:$0xf]
    %v618 = vlaneseq
    %v619 = vshrl.u32 %v618, 7
    %v620 = vsub.s32 0, %v619
    %v621 = vrot.slane %v616, %v620
    %v622 = vlaneseq
    %v623 = vshrl.u32 %v622, 7
    %v624 = vsub.s32 1, %v623
    %v625 = vrot.slane %v616, %v624
    %v626 = vlaneseq
    %v627 = vshrl.u32 %v626, 7
    %v628 = vsub.s32 2, %v627
    %v629 = vrot.slane %v616, %v628
    %v630 = vlaneseq
    %v631 = vshrl.u32 %v630, 7
    %v632 = vsub.s32 3, %v631
    %v633 = vrot.slane %v616, %v632
    %v638 = vmul.f32 %v418, %v621
    %v639 = vmul.f32 %v417, %v625
    %v640 = vmul.f32 %v420, %v629
    %v641 = vmul.f32 %v419, %v633
    %642 = vst [vmem:[#allocation2 + $0x1e0] sm:$0xff] %v638
    %643 = vst [vmem:[#allocation2 + $0x1e8] sm:$0xff] %v639
    %644 = vst [vmem:[#allocation2 + $0x1f0] sm:$0xff] %v640
    %645 = vst [vmem:[#allocation2 + $0x1f8] sm:$0xff] %v641
    %s646 = scalar_lea.vmem [#allocation7], 64
    %v647 = vld [vmem:[%s646] ss:$8 sm:$0xf]
    %v649 = vlaneseq
    %v650 = vshrl.u32 %v649, 7
    %v651 = vsub.s32 0, %v650
    %v652 = vrot.slane %v647, %v651
    %v653 = vlaneseq
    %v654 = vshrl.u32 %v653, 7
    %v655 = vsub.s32 1, %v654
    %v656 = vrot.slane %v647, %v655
    %v657 = vlaneseq
    %v658 = vshrl.u32 %v657, 7
    %v659 = vsub.s32 2, %v658
    %v660 = vrot.slane %v647, %v659
    %v661 = vlaneseq
    %v662 = vshrl.u32 %v661, 7
    %v663 = vsub.s32 3, %v662
    %v664 = vrot.slane %v647, %v663
    %v669 = vmul.f32 %v462, %v652
    %v670 = vmul.f32 %v461, %v656
    %v671 = vmul.f32 %v464, %v660
    %v672 = vmul.f32 %v463, %v664
    %673 = vst [vmem:[#allocation2 + $0x200] sm:$0xff] %v669
    %674 = vst [vmem:[#allocation2 + $0x208] sm:$0xff] %v670
    %675 = vst [vmem:[#allocation2 + $0x210] sm:$0xff] %v671
    %676 = vst [vmem:[#allocation2 + $0x218] sm:$0xff] %v672
    %v677 = vld [vmem:[#allocation9] sm:$0xff]
    %v678 = vld [vmem:[#allocation9 + $0x8] sm:$0xff]
    %v679 = vld [vmem:[#allocation9 + $0x10] sm:$0xff]
    %v680 = vld [vmem:[#allocation9 + $0x18] sm:$0xff]
    %v681 = vld [vmem:[#allocation2] sm:$0xff]
    %v682 = vld [vmem:[#allocation2 + $0x8] sm:$0xff]
    %v683 = vld [vmem:[#allocation2 + $0x10] sm:$0xff]
    %v684 = vld [vmem:[#allocation2 + $0x18] sm:$0xff]
    %v685 = vld [vmem:[#allocation2 + $0x20] sm:$0xff]
    %v686 = vld [vmem:[#allocation2 + $0x28] sm:$0xff]
    %v687 = vld [vmem:[#allocation2 + $0x30] sm:$0xff]
    %v688 = vld [vmem:[#allocation2 + $0x38] sm:$0xff]
    %v689 = vld [vmem:[#allocation2 + $0x40] sm:$0xff]
    %v690 = vld [vmem:[#allocation2 + $0x48] sm:$0xff]
    %v691 = vld [vmem:[#allocation2 + $0x50] sm:$0xff]
    %v692 = vld [vmem:[#allocation2 + $0x58] sm:$0xff]
    %v693 = vld [vmem:[#allocation2 + $0x60] sm:$0xff]
    %v694 = vld [vmem:[#allocation2 + $0x68] sm:$0xff]
    %v695 = vld [vmem:[#allocation2 + $0x70] sm:$0xff]
    %v696 = vld [vmem:[#allocation2 + $0x78] sm:$0xff]
    %v697 = vld [vmem:[#allocation2 + $0x80] sm:$0xff]
    %v698 = vld [vmem:[#allocation2 + $0x88] sm:$0xff]
    %v699 = vld [vmem:[#allocation2 + $0x90] sm:$0xff]
    %v700 = vld [vmem:[#allocation2 + $0x98] sm:$0xff]
    %v701 = vld [vmem:[#allocation2 + $0xa0] sm:$0xff]
    %v702 = vld [vmem:[#allocation2 + $0xa8] sm:$0xff]
    %v703 = vld [vmem:[#allocation2 + $0xb0] sm:$0xff]
    %v704 = vld [vmem:[#allocation2 + $0xb8] sm:$0xff]
    %v705 = vld [vmem:[#allocation2 + $0xc0] sm:$0xff]
    %v706 = vld [vmem:[#allocation2 + $0xc8] sm:$0xff]
    %v707 = vld [vmem:[#allocation2 + $0xd0] sm:$0xff]
    %v708 = vld [vmem:[#allocation2 + $0xd8] sm:$0xff]
    %v709 = vld [vmem:[#allocation2 + $0xe0] sm:$0xff]
    %v710 = vld [vmem:[#allocation2 + $0xe8] sm:$0xff]
    %v711 = vld [vmem:[#allocation2 + $0xf0] sm:$0xff]
    %v712 = vld [vmem:[#allocation2 + $0xf8] sm:$0xff]
    %v713 = vld [vmem:[#allocation2 + $0x100] sm:$0xff]
    %v714 = vld [vmem:[#allocation2 + $0x108] sm:$0xff]
    %v715 = vld [vmem:[#allocation2 + $0x110] sm:$0xff]
    %v716 = vld [vmem:[#allocation2 + $0x118] sm:$0xff]
    %v717 = vld [vmem:[#allocation2 + $0x120] sm:$0xff]
    %v718 = vld [vmem:[#allocation2 + $0x128] sm:$0xff]
    %v719 = vld [vmem:[#allocation2 + $0x130] sm:$0xff]
    %v720 = vld [vmem:[#allocation2 + $0x138] sm:$0xff]
    %v721 = vld [vmem:[#allocation2 + $0x140] sm:$0xff]
    %v722 = vld [vmem:[#allocation2 + $0x148] sm:$0xff]
    %v723 = vld [vmem:[#allocation2 + $0x150] sm:$0xff]
    %v724 = vld [vmem:[#allocation2 + $0x158] sm:$0xff]
    %v725 = vld [vmem:[#allocation2 + $0x160] sm:$0xff]
    %v726 = vld [vmem:[#allocation2 + $0x168] sm:$0xff]
    %v727 = vld [vmem:[#allocation2 + $0x170] sm:$0xff]
    %v728 = vld [vmem:[#allocation2 + $0x178] sm:$0xff]
    %v729 = vld [vmem:[#allocation2 + $0x180] sm:$0xff]
    %v730 = vld [vmem:[#allocation2 + $0x188] sm:$0xff]
    %v731 = vld [vmem:[#allocation2 + $0x190] sm:$0xff]
    %v732 = vld [vmem:[#allocation2 + $0x198] sm:$0xff]
    %v733 = vld [vmem:[#allocation2 + $0x1a0] sm:$0xff]
    %v734 = vld [vmem:[#allocation2 + $0x1a8] sm:$0xff]
    %v735 = vld [vmem:[#allocation2 + $0x1b0] sm:$0xff]
    %v736 = vld [vmem:[#allocation2 + $0x1b8] sm:$0xff]
    %v737 = vld [vmem:[#allocation2 + $0x1c0] sm:$0xff]
    %v738 = vld [vmem:[#allocation2 + $0x1c8] sm:$0xff]
    %v739 = vld [vmem:[#allocation2 + $0x1d0] sm:$0xff]
    %v740 = vld [vmem:[#allocation2 + $0x1d8] sm:$0xff]
    %v741 = vld [vmem:[#allocation2 + $0x1e0] sm:$0xff]
    %v742 = vld [vmem:[#allocation2 + $0x1e8] sm:$0xff]
    %v743 = vld [vmem:[#allocation2 + $0x1f0] sm:$0xff]
    %v744 = vld [vmem:[#allocation2 + $0x1f8] sm:$0xff]
    %v745 = vld [vmem:[#allocation2 + $0x200] sm:$0xff]
    %v746 = vld [vmem:[#allocation2 + $0x208] sm:$0xff]
    %v747 = vld [vmem:[#allocation2 + $0x210] sm:$0xff]
    %v748 = vld [vmem:[#allocation2 + $0x218] sm:$0xff]
    %v749 = vld [vmem:[%s3] sm:$0xff]
    %v750 = vld [vmem:[%s3 + $0x8] sm:$0xff]
    %752 = vset.pattern.permute.xlu0 0
    %753 = vperm.xlu0 %752, %v749
    %v754 = vpop.permute.xlu0 %753
    %757 = vset.pattern.permute.xlu0 0
    %758 = vperm.xlu0 %757, %v750
    %v759 = vpop.permute.xlu0 %758
    %vm761 = vcmask 64512
    %v763 = vsel %vm761, %v678, 0
    %v766 = vsel %vm761, %v680, 0
    %768 = vmatprep.subr.mxu0 %v682
    %769 = vmatpush1.msra.mxu0 %v681
    %770 = vmatprep.subr.mxu0 %v686
    %771 = vmatpush1.msra.mxu0 %v685
    %772 = vmatprep.subr.mxu0 %v690
    %773 = vmatpush1.msra.mxu0 %v689
    %774 = vmatprep.subr.mxu0 %v694
    %775 = vmatpush1.msra.mxu0 %v693
    %776 = vmatprep.subr.mxu0 %v698
    %777 = vmatpush1.msra.mxu0 %v697
    %778 = vmatprep.subr.mxu0 %v702
    %779 = vmatpush1.msra.mxu0 %v701
    %780 = vmatprep.subr.mxu0 %v706
    %781 = vmatpush1.msra.mxu0 %v705
    %782 = vmatprep.subr.mxu0 %v710
    %783 = vmatpush1.msra.mxu0 %v709
    %784 = vmatprep.subr.mxu0 %v714
    %785 = vmatpush1.msra.mxu0 %v713
    %786 = vmatprep.subr.mxu0 %v718
    %787 = vmatpush1.msra.mxu0 %v717
    %788 = vmatprep.subr.mxu0 %v722
    %789 = vmatpush1.msra.mxu0 %v721
    %790 = vmatprep.subr.mxu0 %v726
    %791 = vmatpush1.msra.mxu0 %v725
    %792 = vmatprep.subr.mxu0 %v730
    %793 = vmatpush1.msra.mxu0 %v729
    %794 = vmatprep.subr.mxu0 %v734
    %795 = vmatpush1.msra.mxu0 %v733
    %796 = vmatprep.subr.mxu0 %v738
    %797 = vmatpush1.msra.mxu0 %v737
    %798 = vmatprep.subr.mxu0 %v742
    %799 = vmatpush1.msra.mxu0 %v741
    %800 = vmatprep.subr.mxu0 %v746
    %801 = vmatpush1.msra.mxu0 %v745
    %802 = vmatprep.subr.mxu0 0.0
    %803 = vmatpush1.msra.mxu0 0.0
    %804 = vmatprep.subr.mxu0 0.0
    %805 = vmatpush1.msra.mxu0 0.0
    %806 = vmatprep.subr.mxu0 0.0
    %807 = vmatpush1.msra.mxu0 0.0
    %808 = vmatprep.subr.mxu0 0.0
    %809 = vmatpush1.msra.mxu0 0.0
    %810 = vmatprep.subr.mxu0 0.0
    %811 = vmatpush1.msra.mxu0 0.0
    %812 = vmatprep.subr.mxu0 0.0
    %813 = vmatpush1.msra.mxu0 0.0
    %814 = vmatprep.subr.mxu0 0.0
    %815 = vmatpush1.msra.mxu0 0.0
    %816 = vmatprep.subr.mxu0 0.0
    %817 = vmatpush1.msra.mxu0 0.0
    %818 = vmatprep.subr.mxu0 0.0
    %819 = vmatpush1.msra.mxu0 0.0
    %820 = vmatprep.subr.mxu0 0.0
    %821 = vmatpush1.msra.mxu0 0.0
    %822 = vmatprep.subr.mxu0 0.0
    %823 = vmatpush1.msra.mxu0 0.0
    %824 = vmatprep.subr.mxu0 0.0
    %825 = vmatpush1.msra.mxu0 0.0
    %826 = vmatprep.subr.mxu0 0.0
    %827 = vmatpush1.msra.mxu0 0.0
    %828 = vmatprep.subr.mxu0 0.0
    %829 = vmatpush1.msra.mxu0 0.0
    %830 = vmatprep.subr.mxu0 0.0
    %831 = vmatpush1.msra.mxu0 0.0
    %832 = vmatprep.mubr.f32.mxu0 %v763
    %833 = vmatmul.mubr.f32.gmra.mrb[0].mxu0 %v677
    %v834 = vpop.f32.mrb[0].mxu0
    %v835 = vadd.f32 %v754, %v834
    %v836 = vpop.f32.mrb[0].mxu0
    %v837 = vadd.f32 %v754, %v836
    %838 = vmatprep.mubr.f32.mxu0 %v766
    %839 = vmatmul.mubr.f32.gmra.mrb[0].mxu0 %v679
    %v840 = vpop.f32.mrb[0].mxu0
    %v841 = vadd.f32 %v759, %v840
    %v842 = vpop.f32.mrb[0].mxu0
    %v843 = vadd.f32 %v759, %v842
    %844 = vdwg.mxu0
    %845 = vmatprep.subr.mxu0 %v684
    %846 = vmatpush1.msra.mxu0 %v683
    %847 = vmatprep.subr.mxu0 %v688
    %848 = vmatpush1.msra.mxu0 %v687
    %849 = vmatprep.subr.mxu0 %v692
    %850 = vmatpush1.msra.mxu0 %v691
    %851 = vmatprep.subr.mxu0 %v696
    %852 = vmatpush1.msra.mxu0 %v695
    %853 = vmatprep.subr.mxu0 %v700
    %854 = vmatpush1.msra.mxu0 %v699
    %855 = vmatprep.subr.mxu0 %v704
    %856 = vmatpush1.msra.mxu0 %v703
    %857 = vmatprep.subr.mxu0 %v708
    %858 = vmatpush1.msra.mxu0 %v707
    %859 = vmatprep.subr.mxu0 %v712
    %860 = vmatpush1.msra.mxu0 %v711
    %861 = vmatprep.subr.mxu0 %v716
    %862 = vmatpush1.msra.mxu0 %v715
    %863 = vmatprep.subr.mxu0 %v720
    %864 = vmatpush1.msra.mxu0 %v719
    %865 = vmatprep.subr.mxu0 %v724
    %866 = vmatpush1.msra.mxu0 %v723
    %867 = vmatprep.subr.mxu0 %v728
    %868 = vmatpush1.msra.mxu0 %v727
    %869 = vmatprep.subr.mxu0 %v732
    %870 = vmatpush1.msra.mxu0 %v731
    %871 = vmatprep.subr.mxu0 %v736
    %872 = vmatpush1.msra.mxu0 %v735
    %873 = vmatprep.subr.mxu0 %v740
    %874 = vmatpush1.msra.mxu0 %v739
    %875 = vmatprep.subr.mxu0 %v744
    %876 = vmatpush1.msra.mxu0 %v743
    %877 = vmatprep.subr.mxu0 %v748
    %878 = vmatpush1.msra.mxu0 %v747
    %879 = vmatprep.subr.mxu0 0.0
    %880 = vmatpush1.msra.mxu0 0.0
    %881 = vmatprep.subr.mxu0 0.0
    %882 = vmatpush1.msra.mxu0 0.0
    %883 = vmatprep.subr.mxu0 0.0
    %884 = vmatpush1.msra.mxu0 0.0
    %885 = vmatprep.subr.mxu0 0.0
    %886 = vmatpush1.msra.mxu0 0.0
    %887 = vmatprep.subr.mxu0 0.0
    %888 = vmatpush1.msra.mxu0 0.0
    %889 = vmatprep.subr.mxu0 0.0
    %890 = vmatpush1.msra.mxu0 0.0
    %891 = vmatprep.subr.mxu0 0.0
    %892 = vmatpush1.msra.mxu0 0.0
    %893 = vmatprep.subr.mxu0 0.0
    %894 = vmatpush1.msra.mxu0 0.0
    %895 = vmatprep.subr.mxu0 0.0
    %896 = vmatpush1.msra.mxu0 0.0
    %897 = vmatprep.subr.mxu0 0.0
    %898 = vmatpush1.msra.mxu0 0.0
    %899 = vmatprep.subr.mxu0 0.0
    %900 = vmatpush1.msra.mxu0 0.0
    %901 = vmatprep.subr.mxu0 0.0
    %902 = vmatpush1.msra.mxu0 0.0
    %903 = vmatprep.subr.mxu0 0.0
    %904 = vmatpush1.msra.mxu0 0.0
    %905 = vmatprep.subr.mxu0 0.0
    %906 = vmatpush1.msra.mxu0 0.0
    %907 = vmatprep.subr.mxu0 0.0
    %908 = vmatpush1.msra.mxu0 0.0
    %909 = vmatprep.mubr.f32.mxu0 %v763
    %910 = vmatmul.mubr.f32.gmra.mrb[0].mxu0 %v677
    %v911 = vpop.f32.mrb[0].mxu0
    %v912 = vadd.f32 %v754, %v911
    %v913 = vpop.f32.mrb[0].mxu0
    %v914 = vadd.f32 %v754, %v913
    %915 = vmatprep.mubr.f32.mxu0 %v766
    %916 = vmatmul.mubr.f32.gmra.mrb[0].mxu0 %v679
    %v917 = vpop.f32.mrb[0].mxu0
    %v918 = vadd.f32 %v759, %v917
    %v919 = vpop.f32.mrb[0].mxu0
    %v920 = vadd.f32 %v759, %v919
    %921 = vdwg.mxu0
    %v922 = vmax.f32 %v835, 0.0
    %v923 = vmax.f32 %v837, 0.0
    %v924 = vmax.f32 %v912, 0.0
    %v925 = vmax.f32 %v914, 0.0
    %v926 = vmax.f32 %v841, 0.0
    %v927 = vmax.f32 %v843, 0.0
    %v928 = vmax.f32 %v918, 0.0
    %v929 = vmax.f32 %v920, 0.0
    %930 = vrot.lane.b32.xlu0 %v922, 17
    %v931 = vpop.permute.xlu0 %930
    %932 = vrot.lane.b32.xlu0 %v926, 17
    %v933 = vpop.permute.xlu0 %932
    %934 = vrot.lane.b32.xlu0 %v923, 17
    %v935 = vpop.permute.xlu0 %934
    %936 = vrot.lane.b32.xlu0 %v927, 17
    %v937 = vpop.permute.xlu0 %936
    %938 = vrot.lane.b32.xlu0 %v924, 17
    %v939 = vpop.permute.xlu0 %938
    %940 = vrot.lane.b32.xlu0 %v928, 17
    %v941 = vpop.permute.xlu0 %940
    %942 = vrot.lane.b32.xlu0 %v925, 17
    %v943 = vpop.permute.xlu0 %942
    %944 = vrot.lane.b32.xlu0 %v929, 17
    %v945 = vpop.permute.xlu0 %944
    %vm946 = vcmp.lt.s32.totalorder %v97, 17
    %v947 = vsel %vm946, %v939, %v943
    %v948 = vsel %vm946, %v941, %v945
    %v949 = vsel %vm946, %v935, %v939
    %v950 = vsel %vm946, %v937, %v941
    %v951 = vsel %vm946, %v931, %v935
    %v952 = vsel %vm946, %v933, %v937
    %v953 = vsel %vm946, %v943, %v931
    %v954 = vsel %vm946, %v945, %v933
    %v955 = vld [vmem:[#allocation10] ss:$8 sm:$0xf]
    %v957 = vlaneseq
    %v958 = vshrl.u32 %v957, 7
    %v959 = vsub.s32 0, %v958
    %v960 = vrot.slane %v955, %v959
    %v961 = vlaneseq
    %v962 = vshrl.u32 %v961, 7
    %v963 = vsub.s32 1, %v962
    %v964 = vrot.slane %v955, %v963
    %v965 = vlaneseq
    %v966 = vshrl.u32 %v965, 7
    %v967 = vsub.s32 2, %v966
    %v968 = vrot.slane %v955, %v967
    %v969 = vlaneseq
    %v970 = vshrl.u32 %v969, 7
    %v971 = vsub.s32 3, %v970
    %v972 = vrot.slane %v955, %v971
    %v977 = vmul.f32 %v953, %v960
    %v978 = vmul.f32 %v951, %v964
    %v979 = vmul.f32 %v949, %v968
    %v980 = vmul.f32 %v947, %v972
    %v981 = vmul.f32 %v954, %v960
    %v982 = vmul.f32 %v952, %v964
    %v983 = vmul.f32 %v950, %v968
    %v984 = vmul.f32 %v948, %v972
    %985 = vst [vmem:[#allocation3] sm:$0xff] %v977
    %986 = vst [vmem:[#allocation3 + $0x8] sm:$0xff] %v978
    %987 = vst [vmem:[#allocation3 + $0x10] sm:$0xff] %v979
    %988 = vst [vmem:[#allocation3 + $0x18] sm:$0xff] %v980
    %989 = vst [vmem:[#allocation3 + $0x20] sm:$0xff] %v981
    %990 = vst [vmem:[#allocation3 + $0x28] sm:$0xff] %v982
    %991 = vst [vmem:[#allocation3 + $0x30] sm:$0xff] %v983
    %992 = vst [vmem:[#allocation3 + $0x38] sm:$0xff] %v984
    %993 = vrot.lane.b32.xlu0 %v922, 16
    %v994 = vpop.permute.xlu0 %993
    %995 = vrot.lane.b32.xlu0 %v926, 16
    %v996 = vpop.permute.xlu0 %995
    %997 = vrot.lane.b32.xlu0 %v923, 16
    %v998 = vpop.permute.xlu0 %997
    %999 = vrot.lane.b32.xlu0 %v927, 16
    %v1000 = vpop.permute.xlu0 %999
    %1001 = vrot.lane.b32.xlu0 %v924, 16
    %v1002 = vpop.permute.xlu0 %1001
    %1003 = vrot.lane.b32.xlu0 %v928, 16
    %v1004 = vpop.permute.xlu0 %1003
    %1005 = vrot.lane.b32.xlu0 %v925, 16
    %v1006 = vpop.permute.xlu0 %1005
    %1007 = vrot.lane.b32.xlu0 %v929, 16
    %v1008 = vpop.permute.xlu0 %1007
    %vm1009 = vcmp.lt.s32.totalorder %v97, 16
    %v1010 = vsel %vm1009, %v1002, %v1006
    %v1011 = vsel %vm1009, %v1004, %v1008
    %v1012 = vsel %vm1009, %v998, %v1002
    %v1013 = vsel %vm1009, %v1000, %v1004
    %v1014 = vsel %vm1009, %v994, %v998
    %v1015 = vsel %vm1009, %v996, %v1000
    %v1016 = vsel %vm1009, %v1006, %v994
    %v1017 = vsel %vm1009, %v1008, %v996
    %s1018 = scalar_lea.vmem [#allocation10], 1
    %v1019 = vld [vmem:[%s1018] ss:$8 sm:$0xf]
    %v1021 = vlaneseq
    %v1022 = vshrl.u32 %v1021, 7
    %v1023 = vsub.s32 0, %v1022
    %v1024 = vrot.slane %v1019, %v1023
    %v1025 = vlaneseq
    %v1026 = vshrl.u32 %v1025, 7
    %v1027 = vsub.s32 1, %v1026
    %v1028 = vrot.slane %v1019, %v1027
    %v1029 = vlaneseq
    %v1030 = vshrl.u32 %v1029, 7
    %v1031 = vsub.s32 2, %v1030
    %v1032 = vrot.slane %v1019, %v1031
    %v1033 = vlaneseq
    %v1034 = vshrl.u32 %v1033, 7
    %v1035 = vsub.s32 3, %v1034
    %v1036 = vrot.slane %v1019, %v1035
    %v1041 = vmul.f32 %v1016, %v1024
    %v1042 = vmul.f32 %v1014, %v1028
    %v1043 = vmul.f32 %v1012, %v1032
    %v1044 = vmul.f32 %v1010, %v1036
    %v1045 = vmul.f32 %v1017, %v1024
    %v1046 = vmul.f32 %v1015, %v1028
    %v1047 = vmul.f32 %v1013, %v1032
    %v1048 = vmul.f32 %v1011, %v1036
    %1049 = vst [vmem:[#allocation3 + $0x40] sm:$0xff] %v1041
    %1050 = vst [vmem:[#allocation3 + $0x48] sm:$0xff] %v1042
    %1051 = vst [vmem:[#allocation3 + $0x50] sm:$0xff] %v1043
    %1052 = vst [vmem:[#allocation3 + $0x58] sm:$0xff] %v1044
    %1053 = vst [vmem:[#allocation3 + $0x60] sm:$0xff] %v1045
    %1054 = vst [vmem:[#allocation3 + $0x68] sm:$0xff] %v1046
    %1055 = vst [vmem:[#allocation3 + $0x70] sm:$0xff] %v1047
    %1056 = vst [vmem:[#allocation3 + $0x78] sm:$0xff] %v1048
    %1057 = vrot.lane.b32.xlu0 %v922, 15
    %v1058 = vpop.permute.xlu0 %1057
    %1059 = vrot.lane.b32.xlu0 %v926, 15
    %v1060 = vpop.permute.xlu0 %1059
    %1061 = vrot.lane.b32.xlu0 %v923, 15
    %v1062 = vpop.permute.xlu0 %1061
    %1063 = vrot.lane.b32.xlu0 %v927, 15
    %v1064 = vpop.permute.xlu0 %1063
    %1065 = vrot.lane.b32.xlu0 %v924, 15
    %v1066 = vpop.permute.xlu0 %1065
    %1067 = vrot.lane.b32.xlu0 %v928, 15
    %v1068 = vpop.permute.xlu0 %1067
    %1069 = vrot.lane.b32.xlu0 %v925, 15
    %v1070 = vpop.permute.xlu0 %1069
    %1071 = vrot.lane.b32.xlu0 %v929, 15
    %v1072 = vpop.permute.xlu0 %1071
    %vm1073 = vcmp.lt.s32.totalorder %v97, 15
    %v1074 = vsel %vm1073, %v1066, %v1070
    %v1075 = vsel %vm1073, %v1068, %v1072
    %v1076 = vsel %vm1073, %v1062, %v1066
    %v1077 = vsel %vm1073, %v1064, %v1068
    %v1078 = vsel %vm1073, %v1058, %v1062
    %v1079 = vsel %vm1073, %v1060, %v1064
    %v1080 = vsel %vm1073, %v1070, %v1058
    %v1081 = vsel %vm1073, %v1072, %v1060
    %s1082 = scalar_lea.vmem [#allocation10], 2
    %v1083 = vld [vmem:[%s1082] ss:$8 sm:$0xf]
    %v1085 = vlaneseq
    %v1086 = vshrl.u32 %v1085, 7
    %v1087 = vsub.s32 0, %v1086
    %v1088 = vrot.slane %v1083, %v1087
    %v1089 = vlaneseq
    %v1090 = vshrl.u32 %v1089, 7
    %v1091 = vsub.s32 1, %v1090
    %v1092 = vrot.slane %v1083, %v1091
    %v1093 = vlaneseq
    %v1094 = vshrl.u32 %v1093, 7
    %v1095 = vsub.s32 2, %v1094
    %v1096 = vrot.slane %v1083, %v1095
    %v1097 = vlaneseq
    %v1098 = vshrl.u32 %v1097, 7
    %v1099 = vsub.s32 3, %v1098
    %v1100 = vrot.slane %v1083, %v1099
    %v1105 = vmul.f32 %v1080, %v1088
    %v1106 = vmul.f32 %v1078, %v1092
    %v1107 = vmul.f32 %v1076, %v1096
    %v1108 = vmul.f32 %v1074, %v1100
    %v1109 = vmul.f32 %v1081, %v1088
    %v1110 = vmul.f32 %v1079, %v1092
    %v1111 = vmul.f32 %v1077, %v1096
    %v1112 = vmul.f32 %v1075, %v1100
    %1113 = vst [vmem:[#allocation3 + $0x80] sm:$0xff] %v1105
    %1114 = vst [vmem:[#allocation3 + $0x88] sm:$0xff] %v1106
    %1115 = vst [vmem:[#allocation3 + $0x90] sm:$0xff] %v1107
    %1116 = vst [vmem:[#allocation3 + $0x98] sm:$0xff] %v1108
    %1117 = vst [vmem:[#allocation3 + $0xa0] sm:$0xff] %v1109
    %1118 = vst [vmem:[#allocation3 + $0xa8] sm:$0xff] %v1110
    %1119 = vst [vmem:[#allocation3 + $0xb0] sm:$0xff] %v1111
    %1120 = vst [vmem:[#allocation3 + $0xb8] sm:$0xff] %v1112
    %1121 = vrot.lane.b32.xlu0 %v922, 1
    %v1122 = vpop.permute.xlu0 %1121
    %1123 = vrot.lane.b32.xlu0 %v926, 1
    %v1124 = vpop.permute.xlu0 %1123
    %1125 = vrot.lane.b32.xlu0 %v923, 1
    %v1126 = vpop.permute.xlu0 %1125
    %1127 = vrot.lane.b32.xlu0 %v927, 1
    %v1128 = vpop.permute.xlu0 %1127
    %1129 = vrot.lane.b32.xlu0 %v924, 1
    %v1130 = vpop.permute.xlu0 %1129
    %1131 = vrot.lane.b32.xlu0 %v928, 1
    %v1132 = vpop.permute.xlu0 %1131
    %1133 = vrot.lane.b32.xlu0 %v925, 1
    %v1134 = vpop.permute.xlu0 %1133
    %1135 = vrot.lane.b32.xlu0 %v929, 1
    %v1136 = vpop.permute.xlu0 %1135
    %vm1137 = vcmp.lt.s32.totalorder %v97, 1
    %v1138 = vsel %vm1137, %v1130, %v1134
    %v1139 = vsel %vm1137, %v1132, %v1136
    %v1140 = vsel %vm1137, %v1126, %v1130
    %v1141 = vsel %vm1137, %v1128, %v1132
    %v1142 = vsel %vm1137, %v1122, %v1126
    %v1143 = vsel %vm1137, %v1124, %v1128
    %v1144 = vsel %vm1137, %v1134, %v1122
    %v1145 = vsel %vm1137, %v1136, %v1124
    %s1146 = scalar_lea.vmem [#allocation10], 3
    %v1147 = vld [vmem:[%s1146] ss:$8 sm:$0xf]
    %v1149 = vlaneseq
    %v1150 = vshrl.u32 %v1149, 7
    %v1151 = vsub.s32 0, %v1150
    %v1152 = vrot.slane %v1147, %v1151
    %v1153 = vlaneseq
    %v1154 = vshrl.u32 %v1153, 7
    %v1155 = vsub.s32 1, %v1154
    %v1156 = vrot.slane %v1147, %v1155
    %v1157 = vlaneseq
    %v1158 = vshrl.u32 %v1157, 7
    %v1159 = vsub.s32 2, %v1158
    %v1160 = vrot.slane %v1147, %v1159
    %v1161 = vlaneseq
    %v1162 = vshrl.u32 %v1161, 7
    %v1163 = vsub.s32 3, %v1162
    %v1164 = vrot.slane %v1147, %v1163
    %v1169 = vmul.f32 %v1144, %v1152
    %v1170 = vmul.f32 %v1142, %v1156
    %v1171 = vmul.f32 %v1140, %v1160
    %v1172 = vmul.f32 %v1138, %v1164
    %v1173 = vmul.f32 %v1145, %v1152
    %v1174 = vmul.f32 %v1143, %v1156
    %v1175 = vmul.f32 %v1141, %v1160
    %v1176 = vmul.f32 %v1139, %v1164
    %1177 = vst [vmem:[#allocation3 + $0xc0] sm:$0xff] %v1169
    %1178 = vst [vmem:[#allocation3 + $0xc8] sm:$0xff] %v1170
    %1179 = vst [vmem:[#allocation3 + $0xd0] sm:$0xff] %v1171
    %1180 = vst [vmem:[#allocation3 + $0xd8] sm:$0xff] %v1172
    %1181 = vst [vmem:[#allocation3 + $0xe0] sm:$0xff] %v1173
    %1182 = vst [vmem:[#allocation3 + $0xe8] sm:$0xff] %v1174
    %1183 = vst [vmem:[#allocation3 + $0xf0] sm:$0xff] %v1175
    %1184 = vst [vmem:[#allocation3 + $0xf8] sm:$0xff] %v1176
    %1185 = vst [vmem:[#allocation3 + $0x100] sm:$0xff] %v922
    %1186 = vst [vmem:[#allocation3 + $0x108] sm:$0xff] %v923
    %1187 = vst [vmem:[#allocation3 + $0x110] sm:$0xff] %v924
    %1188 = vst [vmem:[#allocation3 + $0x118] sm:$0xff] %v925
    %1189 = vst [vmem:[#allocation3 + $0x120] sm:$0xff] %v926
    %1190 = vst [vmem:[#allocation3 + $0x128] sm:$0xff] %v927
    %1191 = vst [vmem:[#allocation3 + $0x130] sm:$0xff] %v928
    %1192 = vst [vmem:[#allocation3 + $0x138] sm:$0xff] %v929
    %1193 = vrot.lane.b32.xlu0 %v922, 127
    %v1194 = vpop.permute.xlu0 %1193
    %1195 = vrot.lane.b32.xlu0 %v926, 127
    %v1196 = vpop.permute.xlu0 %1195
    %1197 = vrot.lane.b32.xlu0 %v923, 127
    %v1198 = vpop.permute.xlu0 %1197
    %1199 = vrot.lane.b32.xlu0 %v927, 127
    %v1200 = vpop.permute.xlu0 %1199
    %1201 = vrot.lane.b32.xlu0 %v924, 127
    %v1202 = vpop.permute.xlu0 %1201
    %1203 = vrot.lane.b32.xlu0 %v928, 127
    %v1204 = vpop.permute.xlu0 %1203
    %1205 = vrot.lane.b32.xlu0 %v925, 127
    %v1206 = vpop.permute.xlu0 %1205
    %1207 = vrot.lane.b32.xlu0 %v929, 127
    %v1208 = vpop.permute.xlu0 %1207
    %vm1209 = vcmp.lt.s32.totalorder %v97, 127
    %v1210 = vsel %vm1209, %v1202, %v1206
    %v1211 = vsel %vm1209, %v1204, %v1208
    %v1212 = vsel %vm1209, %v1198, %v1202
    %v1213 = vsel %vm1209, %v1200, %v1204
    %v1214 = vsel %vm1209, %v1194, %v1198
    %v1215 = vsel %vm1209, %v1196, %v1200
    %v1216 = vsel %vm1209, %v1206, %v1194
    %v1217 = vsel %vm1209, %v1208, %v1196
    %s1218 = scalar_lea.vmem [#allocation10], 5
    %v1219 = vld [vmem:[%s1218] ss:$8 sm:$0xf]
    %v1221 = vlaneseq
    %v1222 = vshrl.u32 %v1221, 7
    %v1223 = vsub.s32 0, %v1222
    %v1224 = vrot.slane %v1219, %v1223
    %v1225 = vlaneseq
    %v1226 = vshrl.u32 %v1225, 7
    %v1227 = vsub.s32 1, %v1226
    %v1228 = vrot.slane %v1219, %v1227
    %v1229 = vlaneseq
    %v1230 = vshrl.u32 %v1229, 7
    %v1231 = vsub.s32 2, %v1230
    %v1232 = vrot.slane %v1219, %v1231
    %v1233 = vlaneseq
    %v1234 = vshrl.u32 %v1233, 7
    %v1235 = vsub.s32 3, %v1234
    %v1236 = vrot.slane %v1219, %v1235
    %v1241 = vmul.f32 %v1214, %v1224
    %v1242 = vmul.f32 %v1212, %v1228
    %v1243 = vmul.f32 %v1210, %v1232
    %v1244 = vmul.f32 %v1216, %v1236
    %v1245 = vmul.f32 %v1215, %v1224
    %v1246 = vmul.f32 %v1213, %v1228
    %v1247 = vmul.f32 %v1211, %v1232
    %v1248 = vmul.f32 %v1217, %v1236
    %1249 = vst [vmem:[#allocation3 + $0x140] sm:$0xff] %v1241
    %1250 = vst [vmem:[#allocation3 + $0x148] sm:$0xff] %v1242
    %1251 = vst [vmem:[#allocation3 + $0x150] sm:$0xff] %v1243
    %1252 = vst [vmem:[#allocation3 + $0x158] sm:$0xff] %v1244
    %1253 = vst [vmem:[#allocation3 + $0x160] sm:$0xff] %v1245
    %1254 = vst [vmem:[#allocation3 + $0x168] sm:$0xff] %v1246
    %1255 = vst [vmem:[#allocation3 + $0x170] sm:$0xff] %v1247
    %1256 = vst [vmem:[#allocation3 + $0x178] sm:$0xff] %v1248
    %1257 = vrot.lane.b32.xlu0 %v922, 113
    %v1258 = vpop.permute.xlu0 %1257
    %1259 = vrot.lane.b32.xlu0 %v926, 113
    %v1260 = vpop.permute.xlu0 %1259
    %1261 = vrot.lane.b32.xlu0 %v923, 113
    %v1262 = vpop.permute.xlu0 %1261
    %1263 = vrot.lane.b32.xlu0 %v927, 113
    %v1264 = vpop.permute.xlu0 %1263
    %1265 = vrot.lane.b32.xlu0 %v924, 113
    %v1266 = vpop.permute.xlu0 %1265
    %1267 = vrot.lane.b32.xlu0 %v928, 113
    %v1268 = vpop.permute.xlu0 %1267
    %1269 = vrot.lane.b32.xlu0 %v925, 113
    %v1270 = vpop.permute.xlu0 %1269
    %1271 = vrot.lane.b32.xlu0 %v929, 113
    %v1272 = vpop.permute.xlu0 %1271
    %vm1273 = vcmp.lt.s32.totalorder %v97, 113
    %v1274 = vsel %vm1273, %v1266, %v1270
    %v1275 = vsel %vm1273, %v1268, %v1272
    %v1276 = vsel %vm1273, %v1262, %v1266
    %v1277 = vsel %vm1273, %v1264, %v1268
    %v1278 = vsel %vm1273, %v1258, %v1262
    %v1279 = vsel %vm1273, %v1260, %v1264
    %v1280 = vsel %vm1273, %v1270, %v1258
    %v1281 = vsel %vm1273, %v1272, %v1260
    %s1282 = scalar_lea.vmem [#allocation10], 6
    %v1283 = vld [vmem:[%s1282] ss:$8 sm:$0xf]
    %v1285 = vlaneseq
    %v1286 = vshrl.u32 %v1285, 7
    %v1287 = vsub.s32 0, %v1286
    %v1288 = vrot.slane %v1283, %v1287
    %v1289 = vlaneseq
    %v1290 = vshrl.u32 %v1289, 7
    %v1291 = vsub.s32 1, %v1290
    %v1292 = vrot.slane %v1283, %v1291
    %v1293 = vlaneseq
    %v1294 = vshrl.u32 %v1293, 7
    %v1295 = vsub.s32 2, %v1294
    %v1296 = vrot.slane %v1283, %v1295
    %v1297 = vlaneseq
    %v1298 = vshrl.u32 %v1297, 7
    %v1299 = vsub.s32 3, %v1298
    %v1300 = vrot.slane %v1283, %v1299
    %v1305 = vmul.f32 %v1278, %v1288
    %v1306 = vmul.f32 %v1276, %v1292
    %v1307 = vmul.f32 %v1274, %v1296
    %v1308 = vmul.f32 %v1280, %v1300
    %v1309 = vmul.f32 %v1279, %v1288
    %v1310 = vmul.f32 %v1277, %v1292
    %v1311 = vmul.f32 %v1275, %v1296
    %v1312 = vmul.f32 %v1281, %v1300
    %1313 = vst [vmem:[#allocation3 + $0x180] sm:$0xff] %v1305
    %1314 = vst [vmem:[#allocation3 + $0x188] sm:$0xff] %v1306
    %1315 = vst [vmem:[#allocation3 + $0x190] sm:$0xff] %v1307
    %1316 = vst [vmem:[#allocation3 + $0x198] sm:$0xff] %v1308
    %1317 = vst [vmem:[#allocation3 + $0x1a0] sm:$0xff] %v1309
    %1318 = vst [vmem:[#allocation3 + $0x1a8] sm:$0xff] %v1310
    %1319 = vst [vmem:[#allocation3 + $0x1b0] sm:$0xff] %v1311
    %1320 = vst [vmem:[#allocation3 + $0x1b8] sm:$0xff] %v1312
    %1321 = vrot.lane.b32.xlu0 %v922, 112
    %v1322 = vpop.permute.xlu0 %1321
    %1323 = vrot.lane.b32.xlu0 %v926, 112
    %v1324 = vpop.permute.xlu0 %1323
    %1325 = vrot.lane.b32.xlu0 %v923, 112
    %v1326 = vpop.permute.xlu0 %1325
    %1327 = vrot.lane.b32.xlu0 %v927, 112
    %v1328 = vpop.permute.xlu0 %1327
    %1329 = vrot.lane.b32.xlu0 %v924, 112
    %v1330 = vpop.permute.xlu0 %1329
    %1331 = vrot.lane.b32.xlu0 %v928, 112
    %v1332 = vpop.permute.xlu0 %1331
    %1333 = vrot.lane.b32.xlu0 %v925, 112
    %v1334 = vpop.permute.xlu0 %1333
    %1335 = vrot.lane.b32.xlu0 %v929, 112
    %v1336 = vpop.permute.xlu0 %1335
    %vm1337 = vcmp.lt.s32.totalorder %v97, 112
    %v1338 = vsel %vm1337, %v1330, %v1334
    %v1339 = vsel %vm1337, %v1332, %v1336
    %v1340 = vsel %vm1337, %v1326, %v1330
    %v1341 = vsel %vm1337, %v1328, %v1332
    %v1342 = vsel %vm1337, %v1322, %v1326
    %v1343 = vsel %vm1337, %v1324, %v1328
    %v1344 = vsel %vm1337, %v1334, %v1322
    %v1345 = vsel %vm1337, %v1336, %v1324
    %s1346 = scalar_lea.vmem [#allocation10], 7
    %v1347 = vld [vmem:[%s1346] ss:$8 sm:$0xf]
    %v1349 = vlaneseq
    %v1350 = vshrl.u32 %v1349, 7
    %v1351 = vsub.s32 0, %v1350
    %v1352 = vrot.slane %v1347, %v1351
    %v1353 = vlaneseq
    %v1354 = vshrl.u32 %v1353, 7
    %v1355 = vsub.s32 1, %v1354
    %v1356 = vrot.slane %v1347, %v1355
    %v1357 = vlaneseq
    %v1358 = vshrl.u32 %v1357, 7
    %v1359 = vsub.s32 2, %v1358
    %v1360 = vrot.slane %v1347, %v1359
    %v1361 = vlaneseq
    %v1362 = vshrl.u32 %v1361, 7
    %v1363 = vsub.s32 3, %v1362
    %v1364 = vrot.slane %v1347, %v1363
    %v1369 = vmul.f32 %v1342, %v1352
    %v1370 = vmul.f32 %v1340, %v1356
    %v1371 = vmul.f32 %v1338, %v1360
    %v1372 = vmul.f32 %v1344, %v1364
    %v1373 = vmul.f32 %v1343, %v1352
    %v1374 = vmul.f32 %v1341, %v1356
    %v1375 = vmul.f32 %v1339, %v1360
    %v1376 = vmul.f32 %v1345, %v1364
    %1377 = vst [vmem:[#allocation3 + $0x1c0] sm:$0xff] %v1369
    %1378 = vst [vmem:[#allocation3 + $0x1c8] sm:$0xff] %v1370
    %1379 = vst [vmem:[#allocation3 + $0x1d0] sm:$0xff] %v1371
    %1380 = vst [vmem:[#allocation3 + $0x1d8] sm:$0xff] %v1372
    %1381 = vst [vmem:[#allocation3 + $0x1e0] sm:$0xff] %v1373
    %1382 = vst [vmem:[#allocation3 + $0x1e8] sm:$0xff] %v1374
    %1383 = vst [vmem:[#allocation3 + $0x1f0] sm:$0xff] %v1375
    %1384 = vst [vmem:[#allocation3 + $0x1f8] sm:$0xff] %v1376
    %1385 = vrot.lane.b32.xlu0 %v922, 111
    %v1386 = vpop.permute.xlu0 %1385
    %1387 = vrot.lane.b32.xlu0 %v926, 111
    %v1388 = vpop.permute.xlu0 %1387
    %1389 = vrot.lane.b32.xlu0 %v923, 111
    %v1390 = vpop.permute.xlu0 %1389
    %1391 = vrot.lane.b32.xlu0 %v927, 111
    %v1392 = vpop.permute.xlu0 %1391
    %1393 = vrot.lane.b32.xlu0 %v924, 111
    %v1394 = vpop.permute.xlu0 %1393
    %1395 = vrot.lane.b32.xlu0 %v928, 111
    %v1396 = vpop.permute.xlu0 %1395
    %1397 = vrot.lane.b32.xlu0 %v925, 111
    %v1398 = vpop.permute.xlu0 %1397
    %1399 = vrot.lane.b32.xlu0 %v929, 111
    %v1400 = vpop.permute.xlu0 %1399
    %vm1401 = vcmp.lt.s32.totalorder %v97, 111
    %v1402 = vsel %vm1401, %v1394, %v1398
    %v1403 = vsel %vm1401, %v1396, %v1400
    %v1404 = vsel %vm1401, %v1390, %v1394
    %v1405 = vsel %vm1401, %v1392, %v1396
    %v1406 = vsel %vm1401, %v1386, %v1390
    %v1407 = vsel %vm1401, %v1388, %v1392
    %v1408 = vsel %vm1401, %v1398, %v1386
    %v1409 = vsel %vm1401, %v1400, %v1388
    %s1410 = scalar_lea.vmem [#allocation10], 32
    %v1411 = vld [vmem:[%s1410] ss:$8 sm:$0xf]
    %v1413 = vlaneseq
    %v1414 = vshrl.u32 %v1413, 7
    %v1415 = vsub.s32 0, %v1414
    %v1416 = vrot.slane %v1411, %v1415
    %v1417 = vlaneseq
    %v1418 = vshrl.u32 %v1417, 7
    %v1419 = vsub.s32 1, %v1418
    %v1420 = vrot.slane %v1411, %v1419
    %v1421 = vlaneseq
    %v1422 = vshrl.u32 %v1421, 7
    %v1423 = vsub.s32 2, %v1422
    %v1424 = vrot.slane %v1411, %v1423
    %v1425 = vlaneseq
    %v1426 = vshrl.u32 %v1425, 7
    %v1427 = vsub.s32 3, %v1426
    %v1428 = vrot.slane %v1411, %v1427
    %v1433 = vmul.f32 %v1406, %v1416
    %v1434 = vmul.f32 %v1404, %v1420
    %v1435 = vmul.f32 %v1402, %v1424
    %v1436 = vmul.f32 %v1408, %v1428
    %v1437 = vmul.f32 %v1407, %v1416
    %v1438 = vmul.f32 %v1405, %v1420
    %v1439 = vmul.f32 %v1403, %v1424
    %v1440 = vmul.f32 %v1409, %v1428
    %1441 = vst [vmem:[#allocation3 + $0x200] sm:$0xff] %v1433
    %1442 = vst [vmem:[#allocation3 + $0x208] sm:$0xff] %v1434
    %1443 = vst [vmem:[#allocation3 + $0x210] sm:$0xff] %v1435
    %1444 = vst [vmem:[#allocation3 + $0x218] sm:$0xff] %v1436
    %1445 = vst [vmem:[#allocation3 + $0x220] sm:$0xff] %v1437
    %1446 = vst [vmem:[#allocation3 + $0x228] sm:$0xff] %v1438
    %1447 = vst [vmem:[#allocation3 + $0x230] sm:$0xff] %v1439
    %1448 = vst [vmem:[#allocation3 + $0x238] sm:$0xff] %v1440
    %v1449 = vld [vmem:[%s5] sm:$0xff]
    %v1450 = vld [vmem:[#allocation3] sm:$0xff]
    %v1451 = vld [vmem:[#allocation3 + $0x8] sm:$0xff]
    %v1452 = vld [vmem:[#allocation3 + $0x10] sm:$0xff]
    %v1453 = vld [vmem:[#allocation3 + $0x18] sm:$0xff]
    %v1454 = vld [vmem:[#allocation3 + $0x20] sm:$0xff]
    %v1455 = vld [vmem:[#allocation3 + $0x28] sm:$0xff]
    %v1456 = vld [vmem:[#allocation3 + $0x30] sm:$0xff]
    %v1457 = vld [vmem:[#allocation3 + $0x38] sm:$0xff]
    %v1458 = vld [vmem:[#allocation3 + $0x40] sm:$0xff]
    %v1459 = vld [vmem:[#allocation3 + $0x48] sm:$0xff]
    %v1460 = vld [vmem:[#allocation3 + $0x50] sm:$0xff]
    %v1461 = vld [vmem:[#allocation3 + $0x58] sm:$0xff]
    %v1462 = vld [vmem:[#allocation3 + $0x60] sm:$0xff]
    %v1463 = vld [vmem:[#allocation3 + $0x68] sm:$0xff]
    %v1464 = vld [vmem:[#allocation3 + $0x70] sm:$0xff]
    %v1465 = vld [vmem:[#allocation3 + $0x78] sm:$0xff]
    %v1466 = vld [vmem:[#allocation3 + $0x80] sm:$0xff]
    %v1467 = vld [vmem:[#allocation3 + $0x88] sm:$0xff]
    %v1468 = vld [vmem:[#allocation3 + $0x90] sm:$0xff]
    %v1469 = vld [vmem:[#allocation3 + $0x98] sm:$0xff]
    %v1470 = vld [vmem:[#allocation3 + $0xa0] sm:$0xff]
    %v1471 = vld [vmem:[#allocation3 + $0xa8] sm:$0xff]
    %v1472 = vld [vmem:[#allocation3 + $0xb0] sm:$0xff]
    %v1473 = vld [vmem:[#allocation3 + $0xb8] sm:$0xff]
    %v1474 = vld [vmem:[#allocation3 + $0xc0] sm:$0xff]
    %v1475 = vld [vmem:[#allocation3 + $0xc8] sm:$0xff]
    %v1476 = vld [vmem:[#allocation3 + $0xd0] sm:$0xff]
    %v1477 = vld [vmem:[#allocation3 + $0xd8] sm:$0xff]
    %v1478 = vld [vmem:[#allocation3 + $0xe0] sm:$0xff]
    %v1479 = vld [vmem:[#allocation3 + $0xe8] sm:$0xff]
    %v1480 = vld [vmem:[#allocation3 + $0xf0] sm:$0xff]
    %v1481 = vld [vmem:[#allocation3 + $0xf8] sm:$0xff]
    %v1482 = vld [vmem:[#allocation3 + $0x100] sm:$0xff]
    %v1483 = vld [vmem:[#allocation3 + $0x108] sm:$0xff]
    %v1484 = vld [vmem:[#allocation3 + $0x110] sm:$0xff]
    %v1485 = vld [vmem:[#allocation3 + $0x118] sm:$0xff]
    %v1486 = vld [vmem:[#allocation3 + $0x120] sm:$0xff]
    %v1487 = vld [vmem:[#allocation3 + $0x128] sm:$0xff]
    %v1488 = vld [vmem:[#allocation3 + $0x130] sm:$0xff]
    %v1489 = vld [vmem:[#allocation3 + $0x138] sm:$0xff]
    %v1490 = vld [vmem:[#allocation3 + $0x140] sm:$0xff]
    %v1491 = vld [vmem:[#allocation3 + $0x148] sm:$0xff]
    %v1492 = vld [vmem:[#allocation3 + $0x150] sm:$0xff]
    %v1493 = vld [vmem:[#allocation3 + $0x158] sm:$0xff]
    %v1494 = vld [vmem:[#allocation3 + $0x160] sm:$0xff]
    %v1495 = vld [vmem:[#allocation3 + $0x168] sm:$0xff]
    %v1496 = vld [vmem:[#allocation3 + $0x170] sm:$0xff]
    %v1497 = vld [vmem:[#allocation3 + $0x178] sm:$0xff]
    %v1498 = vld [vmem:[#allocation3 + $0x180] sm:$0xff]
    %v1499 = vld [vmem:[#allocation3 + $0x188] sm:$0xff]
    %v1500 = vld [vmem:[#allocation3 + $0x190] sm:$0xff]
    %v1501 = vld [vmem:[#allocation3 + $0x198] sm:$0xff]
    %v1502 = vld [vmem:[#allocation3 + $0x1a0] sm:$0xff]
    %v1503 = vld [vmem:[#allocation3 + $0x1a8] sm:$0xff]
    %v1504 = vld [vmem:[#allocation3 + $0x1b0] sm:$0xff]
    %v1505 = vld [vmem:[#allocation3 + $0x1b8] sm:$0xff]
    %v1506 = vld [vmem:[#allocation3 + $0x1c0] sm:$0xff]
    %v1507 = vld [vmem:[#allocation3 + $0x1c8] sm:$0xff]
    %v1508 = vld [vmem:[#allocation3 + $0x1d0] sm:$0xff]
    %v1509 = vld [vmem:[#allocation3 + $0x1d8] sm:$0xff]
    %v1510 = vld [vmem:[#allocation3 + $0x1e0] sm:$0xff]
    %v1511 = vld [vmem:[#allocation3 + $0x1e8] sm:$0xff]
    %v1512 = vld [vmem:[#allocation3 + $0x1f0] sm:$0xff]
    %v1513 = vld [vmem:[#allocation3 + $0x1f8] sm:$0xff]
    %v1514 = vld [vmem:[#allocation3 + $0x200] sm:$0xff]
    %v1515 = vld [vmem:[#allocation3 + $0x208] sm:$0xff]
    %v1516 = vld [vmem:[#allocation3 + $0x210] sm:$0xff]
    %v1517 = vld [vmem:[#allocation3 + $0x218] sm:$0xff]
    %v1518 = vld [vmem:[#allocation3 + $0x220] sm:$0xff]
    %v1519 = vld [vmem:[#allocation3 + $0x228] sm:$0xff]
    %v1520 = vld [vmem:[#allocation3 + $0x230] sm:$0xff]
    %v1521 = vld [vmem:[#allocation3 + $0x238] sm:$0xff]
    %v1522 = vld [vmem:[%s6] sm:$0xf]
    %1524 = vset.pattern.permute.xlu0 0
    %1525 = vperm.xlu0 %1524, %v1522
    %v1526 = vpop.permute.xlu0 %1525
    %v1529 = vcombine.high %v1449, %v1449
    %vm1530 = vcmask 130048
    %v1531 = vsel %vm1530, %v1529, 0
    %1533 = vmatprep.subr.mxu0 %v1451
    %1534 = vmatpush1.msra.mxu0 %v1450
    %1535 = vmatprep.subr.mxu0 %v1455
    %1536 = vmatpush1.msra.mxu0 %v1454
    %1537 = vmatprep.subr.mxu0 %v1459
    %1538 = vmatpush1.msra.mxu0 %v1458
    %1539 = vmatprep.subr.mxu0 %v1463
    %1540 = vmatpush1.msra.mxu0 %v1462
    %1541 = vmatprep.subr.mxu0 %v1467
    %1542 = vmatpush1.msra.mxu0 %v1466
    %1543 = vmatprep.subr.mxu0 %v1471
    %1544 = vmatpush1.msra.mxu0 %v1470
    %1545 = vmatprep.subr.mxu0 %v1475
    %1546 = vmatpush1.msra.mxu0 %v1474
    %1547 = vmatprep.subr.mxu0 %v1479
    %1548 = vmatpush1.msra.mxu0 %v1478
    %1549 = vmatprep.subr.mxu0 %v1483
    %1550 = vmatpush1.msra.mxu0 %v1482
    %1551 = vmatprep.subr.mxu0 %v1487
    %1552 = vmatpush1.msra.mxu0 %v1486
    %1553 = vmatprep.subr.mxu0 %v1491
    %1554 = vmatpush1.msra.mxu0 %v1490
    %1555 = vmatprep.subr.mxu0 %v1495
    %1556 = vmatpush1.msra.mxu0 %v1494
    %1557 = vmatprep.subr.mxu0 %v1499
    %1558 = vmatpush1.msra.mxu0 %v1498
    %1559 = vmatprep.subr.mxu0 %v1503
    %1560 = vmatpush1.msra.mxu0 %v1502
    %1561 = vmatprep.subr.mxu0 %v1507
    %1562 = vmatpush1.msra.mxu0 %v1506
    %1563 = vmatprep.subr.mxu0 %v1511
    %1564 = vmatpush1.msra.mxu0 %v1510
    %1565 = vmatprep.subr.mxu0 %v1515
    %1566 = vmatpush1.msra.mxu0 %v1514
    %1567 = vmatprep.subr.mxu0 %v1519
    %1568 = vmatpush1.msra.mxu0 %v1518
    %1569 = vmatprep.subr.mxu0 0.0
    %1570 = vmatpush1.msra.mxu0 0.0
    %1571 = vmatprep.subr.mxu0 0.0
    %1572 = vmatpush1.msra.mxu0 0.0
    %1573 = vmatprep.subr.mxu0 0.0
    %1574 = vmatpush1.msra.mxu0 0.0
    %1575 = vmatprep.subr.mxu0 0.0
    %1576 = vmatpush1.msra.mxu0 0.0
    %1577 = vmatprep.subr.mxu0 0.0
    %1578 = vmatpush1.msra.mxu0 0.0
    %1579 = vmatprep.subr.mxu0 0.0
    %1580 = vmatpush1.msra.mxu0 0.0
    %1581 = vmatprep.subr.mxu0 0.0
    %1582 = vmatpush1.msra.mxu0 0.0
    %1583 = vmatprep.subr.mxu0 0.0
    %1584 = vmatpush1.msra.mxu0 0.0
    %1585 = vmatprep.subr.mxu0 0.0
    %1586 = vmatpush1.msra.mxu0 0.0
    %1587 = vmatprep.subr.mxu0 0.0
    %1588 = vmatpush1.msra.mxu0 0.0
    %1589 = vmatprep.subr.mxu0 0.0
    %1590 = vmatpush1.msra.mxu0 0.0
    %1591 = vmatprep.subr.mxu0 0.0
    %1592 = vmatpush1.msra.mxu0 0.0
    %1593 = vmatprep.subr.mxu0 0.0
    %1594 = vmatpush1.msra.mxu0 0.0
    %1595 = vmatprep.subr.mxu0 0.0
    %1596 = vmatpush1.msra.mxu0 0.0
    %1597 = vmatprep.mubr.f32.mxu0 %v1531
    %1598 = vmatmul.mubr.f32.gmra.mrb[0].mxu0 %v1449
    %v1599 = vpop.f32.mrb[0].mxu0
    %v1600 = vadd.f32 %v1526, %v1599
    %v1601 = vpop.f32.mrb[0].mxu0
    %v1602 = vadd.f32 %v1526, %v1601
    %1603 = vdwg.mxu0
    %1604 = vmatprep.subr.mxu0 %v1453
    %1605 = vmatpush1.msra.mxu0 %v1452
    %1606 = vmatprep.subr.mxu0 %v1457
    %1607 = vmatpush1.msra.mxu0 %v1456
    %1608 = vmatprep.subr.mxu0 %v1461
    %1609 = vmatpush1.msra.mxu0 %v1460
    %1610 = vmatprep.subr.mxu0 %v1465
    %1611 = vmatpush1.msra.mxu0 %v1464
    %1612 = vmatprep.subr.mxu0 %v1469
    %1613 = vmatpush1.msra.mxu0 %v1468
    %1614 = vmatprep.subr.mxu0 %v1473
    %1615 = vmatpush1.msra.mxu0 %v1472
    %1616 = vmatprep.subr.mxu0 %v1477
    %1617 = vmatpush1.msra.mxu0 %v1476
    %1618 = vmatprep.subr.mxu0 %v1481
    %1619 = vmatpush1.msra.mxu0 %v1480
    %1620 = vmatprep.subr.mxu0 %v1485
    %1621 = vmatpush1.msra.mxu0 %v1484
    %1622 = vmatprep.subr.mxu0 %v1489
    %1623 = vmatpush1.msra.mxu0 %v1488
    %1624 = vmatprep.subr.mxu0 %v1493
    %1625 = vmatpush1.msra.mxu0 %v1492
    %1626 = vmatprep.subr.mxu0 %v1497
    %1627 = vmatpush1.msra.mxu0 %v1496
    %1628 = vmatprep.subr.mxu0 %v1501
    %1629 = vmatpush1.msra.mxu0 %v1500
    %1630 = vmatprep.subr.mxu0 %v1505
    %1631 = vmatpush1.msra.mxu0 %v1504
    %1632 = vmatprep.subr.mxu0 %v1509
    %1633 = vmatpush1.msra.mxu0 %v1508
    %1634 = vmatprep.subr.mxu0 %v1513
    %1635 = vmatpush1.msra.mxu0 %v1512
    %1636 = vmatprep.subr.mxu0 %v1517
    %1637 = vmatpush1.msra.mxu0 %v1516
    %1638 = vmatprep.subr.mxu0 %v1521
    %1639 = vmatpush1.msra.mxu0 %v1520
    %1640 = vmatprep.subr.mxu0 0.0
    %1641 = vmatpush1.msra.mxu0 0.0
    %1642 = vmatprep.subr.mxu0 0.0
    %1643 = vmatpush1.msra.mxu0 0.0
    %1644 = vmatprep.subr.mxu0 0.0
    %1645 = vmatpush1.msra.mxu0 0.0
    %1646 = vmatprep.subr.mxu0 0.0
    %1647 = vmatpush1.msra.mxu0 0.0
    %1648 = vmatprep.subr.mxu0 0.0
    %1649 = vmatpush1.msra.mxu0 0.0
    %1650 = vmatprep.subr.mxu0 0.0
    %1651 = vmatpush1.msra.mxu0 0.0
    %1652 = vmatprep.subr.mxu0 0.0
    %1653 = vmatpush1.msra.mxu0 0.0
    %1654 = vmatprep.subr.mxu0 0.0
    %1655 = vmatpush1.msra.mxu0 0.0
    %1656 = vmatprep.subr.mxu0 0.0
    %1657 = vmatpush1.msra.mxu0 0.0
    %1658 = vmatprep.subr.mxu0 0.0
    %1659 = vmatpush1.msra.mxu0 0.0
    %1660 = vmatprep.subr.mxu0 0.0
    %1661 = vmatpush1.msra.mxu0 0.0
    %1662 = vmatprep.subr.mxu0 0.0
    %1663 = vmatpush1.msra.mxu0 0.0
    %1664 = vmatprep.subr.mxu0 0.0
    %1665 = vmatpush1.msra.mxu0 0.0
    %1666 = vmatprep.subr.mxu0 0.0
    %1667 = vmatpush1.msra.mxu0 0.0
    %1668 = vmatprep.mubr.f32.mxu0 %v1531
    %1669 = vmatmul.mubr.f32.gmra.mrb[0].mxu0 %v1449
    %v1670 = vpop.f32.mrb[0].mxu0
    %v1671 = vadd.f32 %v1526, %v1670
    %v1672 = vpop.f32.mrb[0].mxu0
    %v1673 = vadd.f32 %v1526, %v1672
    %1674 = vdwg.mxu0
    %v1675 = vmax.f32 %v1600, 0.0
    %v1676 = vmax.f32 %v1602, 0.0
    %v1677 = vmax.f32 %v1671, 0.0
    %v1678 = vmax.f32 %v1673, 0.0
    %v1683 = vcombine.low %v1675, %v1676
    %v1684 = vcombine.low %v1677, %v1678
    %1687 = vst [vmem:[#allocation12] sm:$0xff] %v1683
    %1688 = vst [vmem:[#allocation12 + $0x8] sm:$0xff] %v1684
    // Predicated region
    $region46: #{tpu_custom_call.1} parent=1 // pred_check
      _
    $region47: #{tpu_custom_call.1} parent=1 // pred_check_branch
      %1690 = sbr.rel (0) target = $region49
    $region48: #{tpu_custom_call.1} parent=1 // pred_region
      %s1692 = ssub.s32 256, 256
      %1693 = vsyncadd [#allocation6], %s1692
      %s1695 = sshll.u32 [#allocation12], 4
      %s1696 = int_to_ptr.vmem [resolvable:$true] %s1695
      %1698 = dma.vmem_to_hbm [thread:$0]  %s1696, 256, %s7, [#allocation6]
    $region49: #{tpu_custom_call.1} parent=1 // pred_fallthru
      _
    // Predicated region
    $region50: #{tpu_custom_call.1} parent=1 // pred_check
      _
    $region51: #{tpu_custom_call.1} parent=1 // pred_check_branch
      %1700 = sbr.rel (0) target = $region53
    $region52: #{tpu_custom_call.1} parent=1 // pred_region
      %1701 = dma.done [#allocation6], 256
    $region53: #{tpu_custom_call.1} parent=1 // pred_fallthru
      _
    %1702 = vsyncpa [#allocation5], 1
    %1703 = vsyncpa [#allocation8], 1
    %1704 = vsyncpa [#allocation11], 1
    %1705 = vsyncpa [#allocation6], 1

</llo_original>
